<compile_context>
chip_gen: v7x
topology: tpu7x:2x2x1
jax: 0.10.0
libtpu: 0.0.40
codegen_flags: <defaults>
</compile_context>

<pallas_src>
import functools

import jax
import jax.numpy as jnp
from jax.experimental import pallas as pl
from jax.experimental.pallas import tpu as pltpu

LANE = 128  # lane width; also the per-layer weight-block edge


def _nvdm_gsm_kernel(x_ref, eps_ref, w_ref, b_ref, xr_ref, mu_ref, lv_ref,
                     *, V, H, T):
    """Single-invocation fused forward.

    w_ref : (6*128, 128) f32 slab of zero-padded 128x128 weight blocks
            [enc | mu | logvar | gsm | dec0 | dec1], each stored (in, out).
    b_ref : (8, 128) f32 slab, rows 0..5 = zero-padded biases in the same order.
    Zero padding in the weight rows/cols guarantees that the "garbage" values
    living in padding lanes of the full-width activations never contaminate a
    downstream matmul.
    """
    x = x_ref[...]                                         # (B, V)
    eps = eps_ref[...]                                     # (B, T)

    # --- encode: hid = relu(dropout(enc_0(x))); dropout == identity (eval) ---
    # TODO(synk): nn.Dropout(p=0.01) has no effect in eval mode; omitted.
    hid = jnp.dot(x, w_ref[0:V, :],
                  preferred_element_type=jnp.float32) + b_ref[0:1, :]
    hid = jnp.maximum(hid, 0.0)                            # (B,128), valid 0:H

    # --- fc_mu / fc_logvar: full 128x128 blocks (zero rows >= H) ---
    mu_f = jnp.dot(hid, w_ref[1 * LANE:2 * LANE, :],
                   preferred_element_type=jnp.float32) + b_ref[1:2, :]
    lv_f = jnp.dot(hid, w_ref[2 * LANE:3 * LANE, :],
                   preferred_element_type=jnp.float32) + b_ref[2:3, :]

    mu = mu_f[:, 0:T]                                      # (B, T)
    lv = lv_f[:, 0:T]                                      # (B, T)
    mu_ref[...] = mu
    lv_ref[...] = lv

    # --- reparameterize: z_ = mu + eps * exp(logvar / 2) ---
    z_ = mu + eps * jnp.exp(lv * 0.5)                      # (B, T)

    # --- GSM: z = softmax(fc_gsm(z_), dim=0)  (softmax over the BATCH axis!) ---
    logits = jnp.dot(z_, w_ref[3 * LANE:3 * LANE + T, :],
                     preferred_element_type=jnp.float32) + b_ref[3:4, :]
    m = jnp.max(logits, axis=0, keepdims=True)
    e = jnp.exp(logits - m)
    # Exact reciprocal: approx=True (EUP vrcp) is ~free but its error budget
    # would not reliably hold the 1e-4 x_reconst check against the reference.
    z = e * pl.reciprocal(jnp.sum(e, axis=0, keepdims=True), approx=False)
    # Padding lanes of `z` hold 1/B; they are killed by the zero rows >= T of
    # the dec_0 weight block below, so no masking is needed.

    # --- decode: h = relu(dec_0(z)); x_reconst = dec_1(h) ---
    h = jnp.maximum(
        jnp.dot(z, w_ref[4 * LANE:5 * LANE, :],
                preferred_element_type=jnp.float32) + b_ref[4:5, :], 0.0)
    xr = jnp.dot(h, w_ref[5 * LANE:6 * LANE, :],
                 preferred_element_type=jnp.float32) + b_ref[5:6, :]
    xr_ref[...] = xr[:, 0:V]


def pack_params(params):
    """One-time, setup-time packing of weights/biases into full-lane slabs.

    The slabs are a pure function of the parameters — call this ONCE and reuse
    the result for every forward call (do not rebuild per step).
    Weights are stored (in, out); biases (1, out).
    """
    V, H = params["w_enc"].shape
    T = params["w_mu"].shape[1]
    assert max(V, H, T) <= LANE
    assert V % 8 == 0 and H % 8 == 0 and T % 8 == 0, "need sublane-aligned dims"

    w_slab = jnp.zeros((6 * LANE, LANE), jnp.float32)

    def put_w(slab, blk, a):
        return slab.at[blk * LANE:blk * LANE + a.shape[0], 0:a.shape[1]].set(a)

    w_slab = put_w(w_slab, 0, params["w_enc"])    # (V, H)
    w_slab = put_w(w_slab, 1, params["w_mu"])     # (H, T)
    w_slab = put_w(w_slab, 2, params["w_lv"])     # (H, T)
    w_slab = put_w(w_slab, 3, params["w_gsm"])    # (T, T)
    w_slab = put_w(w_slab, 4, params["w_dec0"])   # (T, H)
    w_slab = put_w(w_slab, 5, params["w_dec1"])   # (H, V)

    b_slab = jnp.zeros((8, LANE), jnp.float32)
    for i, name in enumerate(["b_enc", "b_mu", "b_lv", "b_gsm", "b_dec0", "b_dec1"]):
        b = params[name]
        b_slab = b_slab.at[i:i + 1, 0:b.shape[1]].set(b)

    return w_slab, b_slab, (V, H, T)


def make_nvdm_gsm_forward(V, H, T):
    """Build the jitted forward: (x, eps, w_slab, b_slab) -> (x_reconst, mu, logvar)."""
    kernel = functools.partial(_nvdm_gsm_kernel, V=V, H=H, T=T)
    vmem = pl.BlockSpec(memory_space=pltpu.MemorySpace.VMEM)

    @jax.jit
    def forward(x, eps, w_slab, b_slab):
        B = x.shape[0]
        return pl.pallas_call(
            kernel,
            out_shape=(
                jax.ShapeDtypeStruct((B, V), jnp.float32),   # x_reconst
                jax.ShapeDtypeStruct((B, T), jnp.float32),   # mu
                jax.ShapeDtypeStruct((B, T), jnp.float32),   # logvar
            ),
            in_specs=[vmem, vmem, vmem, vmem],
            out_specs=(vmem, vmem, vmem),
        )(x, eps, w_slab, b_slab)

    return forward


def make_params(key, encode_dims, decode_dims):
    """Deterministic parameter init. Weights stored as (in, out); biases as (1, out)."""
    V, H, T = encode_dims
    T2, H2, V2 = decode_dims
    assert (T2, H2, V2) == (T, H, V)

    ks = jax.random.split(key, 6)

    def lin(k, fan_in, fan_out):
        # Uniform(-1/sqrt(fan_in), 1/sqrt(fan_in)), like torch.nn.Linear default.
        bound = 1.0 / jnp.sqrt(fan_in)
        kw, kb = jax.random.split(k)
        w = jax.random.uniform(kw, (fan_in, fan_out), jnp.float32, -bound, bound)
        b = jax.random.uniform(kb, (1, fan_out), jnp.float32, -bound, bound)
        return w, b

    w_enc, b_enc = lin(ks[0], V, H)
    w_mu, b_mu = lin(ks[1], H, T)
    w_lv, b_lv = lin(ks[2], H, T)
    w_gsm, b_gsm = lin(ks[3], T, T)
    w_dec0, b_dec0 = lin(ks[4], T, H)
    w_dec1, b_dec1 = lin(ks[5], H, V)

    return dict(
        w_enc=w_enc, b_enc=b_enc,
        w_mu=w_mu, b_mu=b_mu,
        w_lv=w_lv, b_lv=b_lv,
        w_gsm=w_gsm, b_gsm=b_gsm,
        w_dec0=w_dec0, b_dec0=b_dec0,
        w_dec1=w_dec1, b_dec1=b_dec1,
    )


def reference_forward(x, eps, p):
    """Pure-JAX reference replicating the PyTorch forward (eval mode)."""
    hid = jax.nn.relu(x @ p["w_enc"] + p["b_enc"])
    mu = hid @ p["w_mu"] + p["b_mu"]
    logvar = hid @ p["w_lv"] + p["b_lv"]
    z_ = mu + eps * jnp.exp(logvar / 2.0)
    z = jax.nn.softmax(z_ @ p["w_gsm"] + p["b_gsm"], axis=0)
    h = jax.nn.relu(z @ p["w_dec0"] + p["b_dec0"])
    xr = h @ p["w_dec1"] + p["b_dec1"]
    return xr, mu, logvar


if __name__ == "__main__":
    encode_dims = [64, 32, 16]   # V, H, T
    decode_dims = [16, 32, 64]   # T, H, V
    B = 128                      # fills MXU rows; scale B up to amortize launch cost

    key = jax.random.PRNGKey(0)
    k_x, k_eps, k_p = jax.random.split(key, 3)

    x = jax.random.uniform(k_x, (B, encode_dims[0]), jnp.float32)      # bag-of-words-ish
    eps = jax.random.normal(k_eps, (B, encode_dims[-1]), jnp.float32)  # reparam noise
    params = make_params(k_p, encode_dims, decode_dims)

    # --- one-time setup: pack parameters, build the jitted forward ---
    w_slab, b_slab, (V, H, T) = pack_params(params)
    forward = make_nvdm_gsm_forward(V, H, T)

    # --- per-step call: just the pallas kernel, no repacking / reslicing ---
    x_reconst, mu, logvar = forward(x, eps, w_slab, b_slab)
    jax.block_until_ready((x_reconst, mu, logvar))

    # sanity-check against pure-JAX reference
    xr_ref, mu_ref, lv_ref = reference_forward(x, eps, params)
    assert jnp.allclose(x_reconst, xr_ref, atol=1e-4, rtol=1e-4)
    assert jnp.allclose(mu, mu_ref, atol=1e-5, rtol=1e-5)
    assert jnp.allclose(logvar, lv_ref, atol=1e-5, rtol=1e-5)

    print("KERNEL_OK")
</pallas_src>

<mosaic_0001>
module attributes {stable_mosaic.version = 11 : i64} {
  func.func @_nvdm_gsm_kernel(%arg0: memref<128x64xf32, #tpu.memory_space<vmem>>, %arg1: memref<128x16xf32, #tpu.memory_space<vmem>>, %arg2: memref<768x128xf32, #tpu.memory_space<vmem>>, %arg3: memref<8x128xf32, #tpu.memory_space<vmem>>, %arg4: memref<128x64xf32, #tpu.memory_space<vmem>>, %arg5: memref<128x16xf32, #tpu.memory_space<vmem>>, %arg6: memref<128x16xf32, #tpu.memory_space<vmem>>) attributes {dimension_semantics = [], scalar_prefetch = 0 : i64, scratch_operands = 0 : i64, tpu.core_type = #tpu.core_type<tc>} {
    %c0 = arith.constant 0 : index
    %c0_0 = arith.constant 0 : index
    %0 = vector.load %arg0[%c0, %c0_0] : memref<128x64xf32, #tpu.memory_space<vmem>>, vector<128x64xf32>
    %c0_1 = arith.constant 0 : index
    %c0_2 = arith.constant 0 : index
    %1 = vector.load %arg1[%c0_1, %c0_2] : memref<128x16xf32, #tpu.memory_space<vmem>>, vector<128x16xf32>
    %c0_3 = arith.constant 0 : index
    %c0_4 = arith.constant 0 : index
    %2 = vector.load %arg2[%c0_3, %c0_4] : memref<768x128xf32, #tpu.memory_space<vmem>>, vector<64x128xf32>
    %cst = arith.constant dense<0.000000e+00> : vector<128x128xf32>
    %3 = tpu.matmul %0, %2, %cst {dimension_numbers = #tpu.dot_dimension_numbers<[1], [0], [0], [1], [0, 0, 1, 1], [], []>} : vector<128x64xf32>, vector<64x128xf32>, vector<128x128xf32> -> vector<128x128xf32>
    %c0_5 = arith.constant 0 : index
    %c0_6 = arith.constant 0 : index
    %4 = vector.load %arg3[%c0_5, %c0_6] : memref<8x128xf32, #tpu.memory_space<vmem>>, vector<1x128xf32>
    %5 = vector.broadcast %4 : vector<1x128xf32> to vector<128x128xf32>
    %6 = arith.addf %3, %5 : vector<128x128xf32>
    %cst_7 = arith.constant 0.000000e+00 : f32
    %7 = vector.broadcast %cst_7 : f32 to vector<128x128xf32>
    %8 = arith.maximumf %6, %7 : vector<128x128xf32>
    %c128 = arith.constant 128 : index
    %c0_8 = arith.constant 0 : index
    %9 = vector.load %arg2[%c128, %c0_8] : memref<768x128xf32, #tpu.memory_space<vmem>>, vector<128x128xf32>
    %cst_9 = arith.constant dense<0.000000e+00> : vector<128x128xf32>
    %10 = tpu.matmul %8, %9, %cst_9 {dimension_numbers = #tpu.dot_dimension_numbers<[1], [0], [0], [1], [0, 0, 1, 1], [], []>} : vector<128x128xf32>, vector<128x128xf32>, vector<128x128xf32> -> vector<128x128xf32>
    %c1 = arith.constant 1 : index
    %c0_10 = arith.constant 0 : index
    %11 = vector.load %arg3[%c1, %c0_10] : memref<8x128xf32, #tpu.memory_space<vmem>>, vector<1x128xf32>
    %12 = vector.broadcast %11 : vector<1x128xf32> to vector<128x128xf32>
    %13 = arith.addf %10, %12 : vector<128x128xf32>
    %c256 = arith.constant 256 : index
    %c0_11 = arith.constant 0 : index
    %14 = vector.load %arg2[%c256, %c0_11] : memref<768x128xf32, #tpu.memory_space<vmem>>, vector<128x128xf32>
    %cst_12 = arith.constant dense<0.000000e+00> : vector<128x128xf32>
    %15 = tpu.matmul %8, %14, %cst_12 {dimension_numbers = #tpu.dot_dimension_numbers<[1], [0], [0], [1], [0, 0, 1, 1], [], []>} : vector<128x128xf32>, vector<128x128xf32>, vector<128x128xf32> -> vector<128x128xf32>
    %c2 = arith.constant 2 : index
    %c0_13 = arith.constant 0 : index
    %16 = vector.load %arg3[%c2, %c0_13] : memref<8x128xf32, #tpu.memory_space<vmem>>, vector<1x128xf32>
    %17 = vector.broadcast %16 : vector<1x128xf32> to vector<128x128xf32>
    %18 = arith.addf %15, %17 : vector<128x128xf32>
    %19 = vector.extract_strided_slice %13 {offsets = [0, 0], sizes = [128, 16], strides = [1, 1]} : vector<128x128xf32> to vector<128x16xf32>
    %20 = vector.extract_strided_slice %18 {offsets = [0, 0], sizes = [128, 16], strides = [1, 1]} : vector<128x128xf32> to vector<128x16xf32>
    %c0_14 = arith.constant 0 : index
    %c0_15 = arith.constant 0 : index
    %21 = vector.load %arg5[%c0_14, %c0_15] : memref<128x16xf32, #tpu.memory_space<vmem>>, vector<128x16xf32>
    tpu.vector_store %arg5[%c0_14, %c0_15], %19 {strides = array<i32>} : memref<128x16xf32, #tpu.memory_space<vmem>>, vector<128x16xf32>,
    %c0_16 = arith.constant 0 : index
    %c0_17 = arith.constant 0 : index
    %22 = vector.load %arg6[%c0_16, %c0_17] : memref<128x16xf32, #tpu.memory_space<vmem>>, vector<128x16xf32>
    tpu.vector_store %arg6[%c0_16, %c0_17], %20 {strides = array<i32>} : memref<128x16xf32, #tpu.memory_space<vmem>>, vector<128x16xf32>,
    %cst_18 = arith.constant 5.000000e-01 : f32
    %23 = vector.broadcast %cst_18 : f32 to vector<128x16xf32>
    %24 = arith.mulf %20, %23 : vector<128x16xf32>
    %25 = math.exp %24 : vector<128x16xf32>
    %26 = arith.mulf %1, %25 : vector<128x16xf32>
    %27 = arith.addf %19, %26 : vector<128x16xf32>
    %c384 = arith.constant 384 : index
    %c0_19 = arith.constant 0 : index
    %28 = vector.load %arg2[%c384, %c0_19] : memref<768x128xf32, #tpu.memory_space<vmem>>, vector<16x128xf32>
    %cst_20 = arith.constant dense<0.000000e+00> : vector<128x128xf32>
    %29 = tpu.matmul %27, %28, %cst_20 {dimension_numbers = #tpu.dot_dimension_numbers<[1], [0], [0], [1], [0, 0, 1, 1], [], []>} : vector<128x16xf32>, vector<16x128xf32>, vector<128x128xf32> -> vector<128x128xf32>
    %c3 = arith.constant 3 : index
    %c0_21 = arith.constant 0 : index
    %30 = vector.load %arg3[%c3, %c0_21] : memref<8x128xf32, #tpu.memory_space<vmem>>, vector<1x128xf32>
    %31 = vector.broadcast %30 : vector<1x128xf32> to vector<128x128xf32>
    %32 = arith.addf %29, %31 : vector<128x128xf32>
    %cst_22 = arith.constant dense<0xFF800000> : vector<128xf32>
    %33 = vector.multi_reduction <maximumf>, %32, %cst_22 [0] : vector<128x128xf32> to vector<128xf32>
    %34 = vector.shape_cast %33 : vector<128xf32> to vector<1x128xf32>
    %35 = vector.broadcast %34 : vector<1x128xf32> to vector<128x128xf32>
    %36 = arith.subf %32, %35 : vector<128x128xf32>
    %37 = math.exp %36 : vector<128x128xf32>
    %cst_23 = arith.constant dense<0.000000e+00> : vector<128xf32>
    %38 = vector.multi_reduction <add>, %37, %cst_23 [0] : vector<128x128xf32> to vector<128xf32>
    %39 = vector.shape_cast %38 : vector<128xf32> to vector<1x128xf32>
    %40 = tpu.reciprocal %39 : vector<1x128xf32> -> vector<1x128xf32>
    %41 = vector.broadcast %40 : vector<1x128xf32> to vector<128x128xf32>
    %42 = arith.mulf %37, %41 : vector<128x128xf32>
    %c512 = arith.constant 512 : index
    %c0_24 = arith.constant 0 : index
    %43 = vector.load %arg2[%c512, %c0_24] : memref<768x128xf32, #tpu.memory_space<vmem>>, vector<128x128xf32>
    %cst_25 = arith.constant dense<0.000000e+00> : vector<128x128xf32>
    %44 = tpu.matmul %42, %43, %cst_25 {dimension_numbers = #tpu.dot_dimension_numbers<[1], [0], [0], [1], [0, 0, 1, 1], [], []>} : vector<128x128xf32>, vector<128x128xf32>, vector<128x128xf32> -> vector<128x128xf32>
    %c4 = arith.constant 4 : index
    %c0_26 = arith.constant 0 : index
    %45 = vector.load %arg3[%c4, %c0_26] : memref<8x128xf32, #tpu.memory_space<vmem>>, vector<1x128xf32>
    %46 = vector.broadcast %45 : vector<1x128xf32> to vector<128x128xf32>
    %47 = arith.addf %44, %46 : vector<128x128xf32>
    %cst_27 = arith.constant 0.000000e+00 : f32
    %48 = vector.broadcast %cst_27 : f32 to vector<128x128xf32>
    %49 = arith.maximumf %47, %48 : vector<128x128xf32>
    %c640 = arith.constant 640 : index
    %c0_28 = arith.constant 0 : index
    %50 = vector.load %arg2[%c640, %c0_28] : memref<768x128xf32, #tpu.memory_space<vmem>>, vector<128x128xf32>
    %cst_29 = arith.constant dense<0.000000e+00> : vector<128x128xf32>
    %51 = tpu.matmul %49, %50, %cst_29 {dimension_numbers = #tpu.dot_dimension_numbers<[1], [0], [0], [1], [0, 0, 1, 1], [], []>} : vector<128x128xf32>, vector<128x128xf32>, vector<128x128xf32> -> vector<128x128xf32>
    %c5 = arith.constant 5 : index
    %c0_30 = arith.constant 0 : index
    %52 = vector.load %arg3[%c5, %c0_30] : memref<8x128xf32, #tpu.memory_space<vmem>>, vector<1x128xf32>
    %53 = vector.broadcast %52 : vector<1x128xf32> to vector<128x128xf32>
    %54 = arith.addf %51, %53 : vector<128x128xf32>
    %55 = vector.extract_strided_slice %54 {offsets = [0, 0], sizes = [128, 64], strides = [1, 1]} : vector<128x128xf32> to vector<128x64xf32>
    %c0_31 = arith.constant 0 : index
    %c0_32 = arith.constant 0 : index
    %56 = vector.load %arg4[%c0_31, %c0_32] : memref<128x64xf32, #tpu.memory_space<vmem>>, vector<128x64xf32>
    tpu.vector_store %arg4[%c0_31, %c0_32], %55 {strides = array<i32>} : memref<128x64xf32, #tpu.memory_space<vmem>>, vector<128x64xf32>,
    return
  }
}

</mosaic_0001>

<llo_original>
// kernel: forward.1
$region0: #{forward.1}
  #allocation0 [shape = 'u32[]', space=smem, size = 0x4, offset = 0x4, fixed_abs, tag = 'smem constant byte address 0x4 - core index']
  #allocation1 [shape = 'u32[144,128]{1,0:T(1,128)}', space=vmem, size = 0x12000, scoped, tag = 'internal scratch']
  %s0 = inlined_call_operand.vmem [shape: f32[128,64], index: 0, kind: input, shape index: {}]
  %s1 = inlined_call_operand.vmem [shape: f32[128,16], index: 1, kind: input, shape index: {}]
  %s2 = inlined_call_operand.hbm [shape: f32[768,128], index: 2, kind: input, shape index: {}]
  %s3 = inlined_call_operand.vmem [shape: f32[8,128], index: 3, kind: input, shape index: {}]
  %s4 = inlined_call_operand.vmem [shape: f32[128,64], index: 4, kind: output, shape index: {0}]
  %s5 = inlined_call_operand.vmem [shape: f32[128,16], index: 5, kind: output, shape index: {1}]
  %s6 = inlined_call_operand.vmem [shape: f32[128,16], index: 6, kind: output, shape index: {2}]
  %7 = xla_tuple %s4, %s5, %s6
  %s8 = sld [smem:[#allocation0]]
  $region46: #{forward.1} parent=0
    _
  %s10 = ssub.s32 1, %s8
  %s11 = scalar_select 0, %s10, %s8
  $region1: #{forward.1} parent=0
    #allocation2 [shape = 'u8[393216]{0}', space=vmem, size = 0x60000, scoped, tag = 'input window, operand 2, single buffered']
    #allocation3 [shape = 's32[1]{0}', space=sflag, size = 0x4, scoped, tag = 'scoped memory for forward.1']
    %12 = vsyncpa [#allocation3], 0
    // Predicated region
    $region2: #{forward.1} parent=1 // pred_check
      _
    $region3: #{forward.1} parent=1 // pred_check_branch
      %14 = sbr.rel (0) target = $region5
    $region4: #{forward.1} parent=1 // pred_region
      _
    $region5: #{forward.1} parent=1 // pred_fallthru
      _
    // Predicated region
    $region6: #{forward.1} parent=1 // pred_check
      _
    $region7: #{forward.1} parent=1 // pred_check_branch
      %16 = sbr.rel (0) target = $region9
    $region8: #{forward.1} parent=1 // pred_region
      _
    $region9: #{forward.1} parent=1 // pred_fallthru
      _
    // Predicated region
    $region10: #{forward.1} parent=1 // pred_check
      _
    $region11: #{forward.1} parent=1 // pred_check_branch
      %18 = sbr.rel (0) target = $region13
    $region12: #{forward.1} parent=1 // pred_region
      %s20 = ssub.s32 12288, 12288
      %21 = vsyncadd [#allocation3], %s20
      %s22 = sshll.u32 [#allocation2], 4
      %s23 = int_to_ptr.vmem [resolvable:$true] %s22
      %28 = dma.hbm_to_vmem [thread:$0]  %s2, 12288, %s23, [#allocation3], 128, 128, 8
    $region13: #{forward.1} parent=1 // pred_fallthru
      _
    // Predicated region
    $region14: #{forward.1} parent=1 // pred_check
      _
    $region15: #{forward.1} parent=1 // pred_check_branch
      %30 = sbr.rel (0) target = $region17
    $region16: #{forward.1} parent=1 // pred_region
      _
    $region17: #{forward.1} parent=1 // pred_fallthru
      _
    // Predicated region
    $region18: #{forward.1} parent=1 // pred_check
      _
    $region19: #{forward.1} parent=1 // pred_check_branch
      %32 = sbr.rel (0) target = $region21
    $region20: #{forward.1} parent=1 // pred_region
      %33 = dma.done [#allocation3], 12288
    $region21: #{forward.1} parent=1 // pred_fallthru
      _
    %v34 = vld [vmem:[%s0] sm:$0xff]
    %v35 = vld [vmem:[%s0 + $0x8] sm:$0xff]
    %v36 = vld [vmem:[%s0 + $0x10] sm:$0xff]
    %v37 = vld [vmem:[%s0 + $0x18] sm:$0xff]
    %v38 = vld [vmem:[%s0 + $0x20] sm:$0xff]
    %v39 = vld [vmem:[%s0 + $0x28] sm:$0xff]
    %v40 = vld [vmem:[%s0 + $0x30] sm:$0xff]
    %v41 = vld [vmem:[%s0 + $0x38] sm:$0xff]
    %v42 = vld [vmem:[%s0 + $0x40] sm:$0xff]
    %v43 = vld [vmem:[%s0 + $0x48] sm:$0xff]
    %v44 = vld [vmem:[%s0 + $0x50] sm:$0xff]
    %v45 = vld [vmem:[%s0 + $0x58] sm:$0xff]
    %v46 = vld [vmem:[%s0 + $0x60] sm:$0xff]
    %v47 = vld [vmem:[%s0 + $0x68] sm:$0xff]
    %v48 = vld [vmem:[%s0 + $0x70] sm:$0xff]
    %v49 = vld [vmem:[%s0 + $0x78] sm:$0xff]
    %v50 = vld [vmem:[%s1] sm:$0xff]
    %v51 = vld [vmem:[%s1 + $0x8] sm:$0xff]
    %v52 = vld [vmem:[%s1 + $0x10] sm:$0xff]
    %v53 = vld [vmem:[%s1 + $0x18] sm:$0xff]
    %v54 = vld [vmem:[%s1 + $0x20] sm:$0xff]
    %v55 = vld [vmem:[%s1 + $0x28] sm:$0xff]
    %v56 = vld [vmem:[%s1 + $0x30] sm:$0xff]
    %v57 = vld [vmem:[%s1 + $0x38] sm:$0xff]
    %v58 = vld [vmem:[%s1 + $0x40] sm:$0xff]
    %v59 = vld [vmem:[%s1 + $0x48] sm:$0xff]
    %v60 = vld [vmem:[%s1 + $0x50] sm:$0xff]
    %v61 = vld [vmem:[%s1 + $0x58] sm:$0xff]
    %v62 = vld [vmem:[%s1 + $0x60] sm:$0xff]
    %v63 = vld [vmem:[%s1 + $0x68] sm:$0xff]
    %v64 = vld [vmem:[%s1 + $0x70] sm:$0xff]
    %v65 = vld [vmem:[%s1 + $0x78] sm:$0xff]
    %v66 = vld [vmem:[#allocation2] sm:$0xff]
    %v67 = vld [vmem:[#allocation2 + $0x8] sm:$0xff]
    %v68 = vld [vmem:[#allocation2 + $0x10] sm:$0xff]
    %v69 = vld [vmem:[#allocation2 + $0x18] sm:$0xff]
    %v70 = vld [vmem:[#allocation2 + $0x20] sm:$0xff]
    %v71 = vld [vmem:[#allocation2 + $0x28] sm:$0xff]
    %v72 = vld [vmem:[#allocation2 + $0x30] sm:$0xff]
    %v73 = vld [vmem:[#allocation2 + $0x38] sm:$0xff]
    %v74 = vld [vmem:[%s3] sm:$0x1]
    %v75 = vlaneseq
    %v76 = vshrl.u32 %v75, 7
    %v77 = vsub.s32 0, %v76
    %v78 = vrot.slane %v74, %v77
    %vm79 = vcmask 523264
    %v81 = vsel %vm79, %v34, 0
    %v84 = vsel %vm79, %v35, 0
    %v87 = vsel %vm79, %v36, 0
    %v90 = vsel %vm79, %v37, 0
    %v93 = vsel %vm79, %v38, 0
    %v96 = vsel %vm79, %v39, 0
    %v99 = vsel %vm79, %v40, 0
    %v102 = vsel %vm79, %v41, 0
    %v105 = vsel %vm79, %v42, 0
    %v108 = vsel %vm79, %v43, 0
    %v111 = vsel %vm79, %v44, 0
    %v114 = vsel %vm79, %v45, 0
    %v117 = vsel %vm79, %v46, 0
    %v120 = vsel %vm79, %v47, 0
    %v123 = vsel %vm79, %v48, 0
    %v126 = vsel %vm79, %v49, 0
    %128 = vmatprep.subr.mxu0 0.0
    %129 = vmatpush1.msra.mxu0 %v66
    %130 = vmatprep.subr.mxu0 0.0
    %131 = vmatpush1.msra.mxu0 %v67
    %132 = vmatprep.subr.mxu0 0.0
    %133 = vmatpush1.msra.mxu0 %v68
    %134 = vmatprep.subr.mxu0 0.0
    %135 = vmatpush1.msra.mxu0 %v69
    %136 = vmatprep.subr.mxu0 0.0
    %137 = vmatpush1.msra.mxu0 %v70
    %138 = vmatprep.subr.mxu0 0.0
    %139 = vmatpush1.msra.mxu0 %v71
    %140 = vmatprep.subr.mxu0 0.0
    %141 = vmatpush1.msra.mxu0 %v72
    %142 = vmatprep.subr.mxu0 0.0
    %143 = vmatpush1.msra.mxu0 %v73
    %144 = vmatprep.subr.mxu0 0.0
    %145 = vmatpush1.msra.mxu0 0.0
    %146 = vmatprep.subr.mxu0 0.0
    %147 = vmatpush1.msra.mxu0 0.0
    %148 = vmatprep.subr.mxu0 0.0
    %149 = vmatpush1.msra.mxu0 0.0
    %150 = vmatprep.subr.mxu0 0.0
    %151 = vmatpush1.msra.mxu0 0.0
    %152 = vmatprep.subr.mxu0 0.0
    %153 = vmatpush1.msra.mxu0 0.0
    %154 = vmatprep.subr.mxu0 0.0
    %155 = vmatpush1.msra.mxu0 0.0
    %156 = vmatprep.subr.mxu0 0.0
    %157 = vmatpush1.msra.mxu0 0.0
    %158 = vmatprep.subr.mxu0 0.0
    %159 = vmatpush1.msra.mxu0 0.0
    %160 = vmatprep.subr.mxu0 0.0
    %161 = vmatpush1.msra.mxu0 0.0
    %162 = vmatprep.subr.mxu0 0.0
    %163 = vmatpush1.msra.mxu0 0.0
    %164 = vmatprep.subr.mxu0 0.0
    %165 = vmatpush1.msra.mxu0 0.0
    %166 = vmatprep.subr.mxu0 0.0
    %167 = vmatpush1.msra.mxu0 0.0
    %168 = vmatprep.subr.mxu0 0.0
    %169 = vmatpush1.msra.mxu0 0.0
    %170 = vmatprep.subr.mxu0 0.0
    %171 = vmatpush1.msra.mxu0 0.0
    %172 = vmatprep.subr.mxu0 0.0
    %173 = vmatpush1.msra.mxu0 0.0
    %174 = vmatprep.subr.mxu0 0.0
    %175 = vmatpush1.msra.mxu0 0.0
    %176 = vmatprep.subr.mxu0 0.0
    %177 = vmatpush1.msra.mxu0 0.0
    %178 = vmatprep.subr.mxu0 0.0
    %179 = vmatpush1.msra.mxu0 0.0
    %180 = vmatprep.subr.mxu0 0.0
    %181 = vmatpush1.msra.mxu0 0.0
    %182 = vmatprep.subr.mxu0 0.0
    %183 = vmatpush1.msra.mxu0 0.0
    %184 = vmatprep.subr.mxu0 0.0
    %185 = vmatpush1.msra.mxu0 0.0
    %186 = vmatprep.subr.mxu0 0.0
    %187 = vmatpush1.msra.mxu0 0.0
    %188 = vmatprep.subr.mxu0 0.0
    %189 = vmatpush1.msra.mxu0 0.0
    %190 = vmatprep.subr.mxu0 0.0
    %191 = vmatpush1.msra.mxu0 0.0
    %192 = vmatprep.mubr.f32.mxu0 0.0
    %193 = vmatmul.mubr.f32.gmra.mrb[0].mxu0 %v81
    %v194 = vpop.f32.mrb[0].mxu0
    %v195 = vadd.f32 %v78, %v194
    %v196 = vpop.f32.mrb[0].mxu0
    %197 = vmatprep.mubr.f32.mxu0 0.0
    %198 = vmatmul.mubr.f32.gmra.mrb[0].mxu0 %v84
    %v199 = vpop.f32.mrb[0].mxu0
    %v200 = vadd.f32 %v78, %v199
    %v201 = vpop.f32.mrb[0].mxu0
    %202 = vmatprep.mubr.f32.mxu0 0.0
    %203 = vmatmul.mubr.f32.gmra.mrb[0].mxu0 %v87
    %v204 = vpop.f32.mrb[0].mxu0
    %v205 = vadd.f32 %v78, %v204
    %v206 = vpop.f32.mrb[0].mxu0
    %207 = vmatprep.mubr.f32.mxu0 0.0
    %208 = vmatmul.mubr.f32.gmra.mrb[0].mxu0 %v90
    %v209 = vpop.f32.mrb[0].mxu0
    %v210 = vadd.f32 %v78, %v209
    %v211 = vpop.f32.mrb[0].mxu0
    %212 = vmatprep.mubr.f32.mxu0 0.0
    %213 = vmatmul.mubr.f32.gmra.mrb[0].mxu0 %v93
    %v214 = vpop.f32.mrb[0].mxu0
    %v215 = vadd.f32 %v78, %v214
    %v216 = vpop.f32.mrb[0].mxu0
    %217 = vmatprep.mubr.f32.mxu0 0.0
    %218 = vmatmul.mubr.f32.gmra.mrb[0].mxu0 %v96
    %v219 = vpop.f32.mrb[0].mxu0
    %v220 = vadd.f32 %v78, %v219
    %v221 = vpop.f32.mrb[0].mxu0
    %222 = vmatprep.mubr.f32.mxu0 0.0
    %223 = vmatmul.mubr.f32.gmra.mrb[0].mxu0 %v99
    %v224 = vpop.f32.mrb[0].mxu0
    %v225 = vadd.f32 %v78, %v224
    %v226 = vpop.f32.mrb[0].mxu0
    %227 = vmatprep.mubr.f32.mxu0 0.0
    %228 = vmatmul.mubr.f32.gmra.mrb[0].mxu0 %v102
    %v229 = vpop.f32.mrb[0].mxu0
    %v230 = vadd.f32 %v78, %v229
    %v231 = vpop.f32.mrb[0].mxu0
    %232 = vmatprep.mubr.f32.mxu0 0.0
    %233 = vmatmul.mubr.f32.gmra.mrb[0].mxu0 %v105
    %v234 = vpop.f32.mrb[0].mxu0
    %v235 = vadd.f32 %v78, %v234
    %v236 = vpop.f32.mrb[0].mxu0
    %237 = vmatprep.mubr.f32.mxu0 0.0
    %238 = vmatmul.mubr.f32.gmra.mrb[0].mxu0 %v108
    %v239 = vpop.f32.mrb[0].mxu0
    %v240 = vadd.f32 %v78, %v239
    %v241 = vpop.f32.mrb[0].mxu0
    %242 = vmatprep.mubr.f32.mxu0 0.0
    %243 = vmatmul.mubr.f32.gmra.mrb[0].mxu0 %v111
    %v244 = vpop.f32.mrb[0].mxu0
    %v245 = vadd.f32 %v78, %v244
    %v246 = vpop.f32.mrb[0].mxu0
    %247 = vmatprep.mubr.f32.mxu0 0.0
    %248 = vmatmul.mubr.f32.gmra.mrb[0].mxu0 %v114
    %v249 = vpop.f32.mrb[0].mxu0
    %v250 = vadd.f32 %v78, %v249
    %v251 = vpop.f32.mrb[0].mxu0
    %252 = vmatprep.mubr.f32.mxu0 0.0
    %253 = vmatmul.mubr.f32.gmra.mrb[0].mxu0 %v117
    %v254 = vpop.f32.mrb[0].mxu0
    %v255 = vadd.f32 %v78, %v254
    %v256 = vpop.f32.mrb[0].mxu0
    %257 = vmatprep.mubr.f32.mxu0 0.0
    %258 = vmatmul.mubr.f32.gmra.mrb[0].mxu0 %v120
    %v259 = vpop.f32.mrb[0].mxu0
    %v260 = vadd.f32 %v78, %v259
    %v261 = vpop.f32.mrb[0].mxu0
    %262 = vmatprep.mubr.f32.mxu0 0.0
    %263 = vmatmul.mubr.f32.gmra.mrb[0].mxu0 %v123
    %v264 = vpop.f32.mrb[0].mxu0
    %v265 = vadd.f32 %v78, %v264
    %v266 = vpop.f32.mrb[0].mxu0
    %267 = vmatprep.mubr.f32.mxu0 0.0
    %268 = vmatmul.mubr.f32.gmra.mrb[0].mxu0 %v126
    %v269 = vpop.f32.mrb[0].mxu0
    %v270 = vadd.f32 %v78, %v269
    %v271 = vpop.f32.mrb[0].mxu0
    %272 = vdwg.mxu0
    %v273 = vmax.f32 %v195, 0.0
    %v274 = vmax.f32 %v200, 0.0
    %v275 = vmax.f32 %v205, 0.0
    %v276 = vmax.f32 %v210, 0.0
    %v277 = vmax.f32 %v215, 0.0
    %v278 = vmax.f32 %v220, 0.0
    %v279 = vmax.f32 %v225, 0.0
    %v280 = vmax.f32 %v230, 0.0
    %v281 = vmax.f32 %v235, 0.0
    %v282 = vmax.f32 %v240, 0.0
    %v283 = vmax.f32 %v245, 0.0
    %v284 = vmax.f32 %v250, 0.0
    %v285 = vmax.f32 %v255, 0.0
    %v286 = vmax.f32 %v260, 0.0
    %v287 = vmax.f32 %v265, 0.0
    %v288 = vmax.f32 %v270, 0.0
    %v289 = vld [vmem:[#allocation2 + $0x80] sm:$0xff]
    %v290 = vld [vmem:[#allocation2 + $0x88] sm:$0xff]
    %v291 = vld [vmem:[#allocation2 + $0x90] sm:$0xff]
    %v292 = vld [vmem:[#allocation2 + $0x98] sm:$0xff]
    %v293 = vld [vmem:[#allocation2 + $0xa0] sm:$0xff]
    %v294 = vld [vmem:[#allocation2 + $0xa8] sm:$0xff]
    %v295 = vld [vmem:[#allocation2 + $0xb0] sm:$0xff]
    %v296 = vld [vmem:[#allocation2 + $0xb8] sm:$0xff]
    %v297 = vld [vmem:[#allocation2 + $0xc0] sm:$0xff]
    %v298 = vld [vmem:[#allocation2 + $0xc8] sm:$0xff]
    %v299 = vld [vmem:[#allocation2 + $0xd0] sm:$0xff]
    %v300 = vld [vmem:[#allocation2 + $0xd8] sm:$0xff]
    %v301 = vld [vmem:[#allocation2 + $0xe0] sm:$0xff]
    %v302 = vld [vmem:[#allocation2 + $0xe8] sm:$0xff]
    %v303 = vld [vmem:[#allocation2 + $0xf0] sm:$0xff]
    %v304 = vld [vmem:[#allocation2 + $0xf8] sm:$0xff]
    %v305 = vld [vmem:[%s3 + $0x1] sm:$0x1]
    %v306 = vlaneseq
    %v307 = vshrl.u32 %v306, 7
    %v308 = vsub.s32 0, %v307
    %v309 = vrot.slane %v305, %v308
    %310 = vmatprep.subr.mxu0 0.0
    %311 = vmatpush1.msra.mxu0 %v289
    %312 = vmatprep.subr.mxu0 0.0
    %313 = vmatpush1.msra.mxu0 %v290
    %314 = vmatprep.subr.mxu0 0.0
    %315 = vmatpush1.msra.mxu0 %v291
    %316 = vmatprep.subr.mxu0 0.0
    %317 = vmatpush1.msra.mxu0 %v292
    %318 = vmatprep.subr.mxu0 0.0
    %319 = vmatpush1.msra.mxu0 %v293
    %320 = vmatprep.subr.mxu0 0.0
    %321 = vmatpush1.msra.mxu0 %v294
    %322 = vmatprep.subr.mxu0 0.0
    %323 = vmatpush1.msra.mxu0 %v295
    %324 = vmatprep.subr.mxu0 0.0
    %325 = vmatpush1.msra.mxu0 %v296
    %326 = vmatprep.subr.mxu0 0.0
    %327 = vmatpush1.msra.mxu0 %v297
    %328 = vmatprep.subr.mxu0 0.0
    %329 = vmatpush1.msra.mxu0 %v298
    %330 = vmatprep.subr.mxu0 0.0
    %331 = vmatpush1.msra.mxu0 %v299
    %332 = vmatprep.subr.mxu0 0.0
    %333 = vmatpush1.msra.mxu0 %v300
    %334 = vmatprep.subr.mxu0 0.0
    %335 = vmatpush1.msra.mxu0 %v301
    %336 = vmatprep.subr.mxu0 0.0
    %337 = vmatpush1.msra.mxu0 %v302
    %338 = vmatprep.subr.mxu0 0.0
    %339 = vmatpush1.msra.mxu0 %v303
    %340 = vmatprep.subr.mxu0 0.0
    %341 = vmatpush1.msra.mxu0 %v304
    %342 = vmatprep.subr.mxu0 0.0
    %343 = vmatpush1.msra.mxu0 0.0
    %344 = vmatprep.subr.mxu0 0.0
    %345 = vmatpush1.msra.mxu0 0.0
    %346 = vmatprep.subr.mxu0 0.0
    %347 = vmatpush1.msra.mxu0 0.0
    %348 = vmatprep.subr.mxu0 0.0
    %349 = vmatpush1.msra.mxu0 0.0
    %350 = vmatprep.subr.mxu0 0.0
    %351 = vmatpush1.msra.mxu0 0.0
    %352 = vmatprep.subr.mxu0 0.0
    %353 = vmatpush1.msra.mxu0 0.0
    %354 = vmatprep.subr.mxu0 0.0
    %355 = vmatpush1.msra.mxu0 0.0
    %356 = vmatprep.subr.mxu0 0.0
    %357 = vmatpush1.msra.mxu0 0.0
    %358 = vmatprep.subr.mxu0 0.0
    %359 = vmatpush1.msra.mxu0 0.0
    %360 = vmatprep.subr.mxu0 0.0
    %361 = vmatpush1.msra.mxu0 0.0
    %362 = vmatprep.subr.mxu0 0.0
    %363 = vmatpush1.msra.mxu0 0.0
    %364 = vmatprep.subr.mxu0 0.0
    %365 = vmatpush1.msra.mxu0 0.0
    %366 = vmatprep.subr.mxu0 0.0
    %367 = vmatpush1.msra.mxu0 0.0
    %368 = vmatprep.subr.mxu0 0.0
    %369 = vmatpush1.msra.mxu0 0.0
    %370 = vmatprep.subr.mxu0 0.0
    %371 = vmatpush1.msra.mxu0 0.0
    %372 = vmatprep.subr.mxu0 0.0
    %373 = vmatpush1.msra.mxu0 0.0
    %374 = vmatprep.mubr.f32.mxu0 0.0
    %375 = vmatmul.mubr.f32.gmra.mrb[0].mxu0 %v273
    %v376 = vpop.f32.mrb[0].mxu0
    %v377 = vadd.f32 %v309, %v376
    %v378 = vpop.f32.mrb[0].mxu0
    %379 = vmatprep.mubr.f32.mxu0 0.0
    %380 = vmatmul.mubr.f32.gmra.mrb[0].mxu0 %v274
    %v381 = vpop.f32.mrb[0].mxu0
    %v382 = vadd.f32 %v309, %v381
    %v383 = vpop.f32.mrb[0].mxu0
    %384 = vmatprep.mubr.f32.mxu0 0.0
    %385 = vmatmul.mubr.f32.gmra.mrb[0].mxu0 %v275
    %v386 = vpop.f32.mrb[0].mxu0
    %v387 = vadd.f32 %v309, %v386
    %v388 = vpop.f32.mrb[0].mxu0
    %389 = vmatprep.mubr.f32.mxu0 0.0
    %390 = vmatmul.mubr.f32.gmra.mrb[0].mxu0 %v276
    %v391 = vpop.f32.mrb[0].mxu0
    %v392 = vadd.f32 %v309, %v391
    %v393 = vpop.f32.mrb[0].mxu0
    %394 = vmatprep.mubr.f32.mxu0 0.0
    %395 = vmatmul.mubr.f32.gmra.mrb[0].mxu0 %v277
    %v396 = vpop.f32.mrb[0].mxu0
    %v397 = vadd.f32 %v309, %v396
    %v398 = vpop.f32.mrb[0].mxu0
    %399 = vmatprep.mubr.f32.mxu0 0.0
    %400 = vmatmul.mubr.f32.gmra.mrb[0].mxu0 %v278
    %v401 = vpop.f32.mrb[0].mxu0
    %v402 = vadd.f32 %v309, %v401
    %v403 = vpop.f32.mrb[0].mxu0
    %404 = vmatprep.mubr.f32.mxu0 0.0
    %405 = vmatmul.mubr.f32.gmra.mrb[0].mxu0 %v279
    %v406 = vpop.f32.mrb[0].mxu0
    %v407 = vadd.f32 %v309, %v406
    %v408 = vpop.f32.mrb[0].mxu0
    %409 = vmatprep.mubr.f32.mxu0 0.0
    %410 = vmatmul.mubr.f32.gmra.mrb[0].mxu0 %v280
    %v411 = vpop.f32.mrb[0].mxu0
    %v412 = vadd.f32 %v309, %v411
    %v413 = vpop.f32.mrb[0].mxu0
    %414 = vmatprep.mubr.f32.mxu0 0.0
    %415 = vmatmul.mubr.f32.gmra.mrb[0].mxu0 %v281
    %v416 = vpop.f32.mrb[0].mxu0
    %v417 = vadd.f32 %v309, %v416
    %v418 = vpop.f32.mrb[0].mxu0
    %419 = vmatprep.mubr.f32.mxu0 0.0
    %420 = vmatmul.mubr.f32.gmra.mrb[0].mxu0 %v282
    %v421 = vpop.f32.mrb[0].mxu0
    %v422 = vadd.f32 %v309, %v421
    %v423 = vpop.f32.mrb[0].mxu0
    %424 = vmatprep.mubr.f32.mxu0 0.0
    %425 = vmatmul.mubr.f32.gmra.mrb[0].mxu0 %v283
    %v426 = vpop.f32.mrb[0].mxu0
    %v427 = vadd.f32 %v309, %v426
    %v428 = vpop.f32.mrb[0].mxu0
    %429 = vmatprep.mubr.f32.mxu0 0.0
    %430 = vmatmul.mubr.f32.gmra.mrb[0].mxu0 %v284
    %v431 = vpop.f32.mrb[0].mxu0
    %v432 = vadd.f32 %v309, %v431
    %v433 = vpop.f32.mrb[0].mxu0
    %434 = vmatprep.mubr.f32.mxu0 0.0
    %435 = vmatmul.mubr.f32.gmra.mrb[0].mxu0 %v285
    %v436 = vpop.f32.mrb[0].mxu0
    %v437 = vadd.f32 %v309, %v436
    %v438 = vpop.f32.mrb[0].mxu0
    %439 = vmatprep.mubr.f32.mxu0 0.0
    %440 = vmatmul.mubr.f32.gmra.mrb[0].mxu0 %v286
    %v441 = vpop.f32.mrb[0].mxu0
    %v442 = vadd.f32 %v309, %v441
    %v443 = vpop.f32.mrb[0].mxu0
    %444 = vmatprep.mubr.f32.mxu0 0.0
    %445 = vmatmul.mubr.f32.gmra.mrb[0].mxu0 %v287
    %v446 = vpop.f32.mrb[0].mxu0
    %v447 = vadd.f32 %v309, %v446
    %v448 = vpop.f32.mrb[0].mxu0
    %449 = vmatprep.mubr.f32.mxu0 0.0
    %450 = vmatmul.mubr.f32.gmra.mrb[0].mxu0 %v288
    %v451 = vpop.f32.mrb[0].mxu0
    %v452 = vadd.f32 %v309, %v451
    %v453 = vpop.f32.mrb[0].mxu0
    %454 = vdwg.mxu0
    %v455 = vld [vmem:[#allocation2 + $0x100] sm:$0xff]
    %v456 = vld [vmem:[#allocation2 + $0x108] sm:$0xff]
    %v457 = vld [vmem:[#allocation2 + $0x110] sm:$0xff]
    %v458 = vld [vmem:[#allocation2 + $0x118] sm:$0xff]
    %v459 = vld [vmem:[#allocation2 + $0x120] sm:$0xff]
    %v460 = vld [vmem:[#allocation2 + $0x128] sm:$0xff]
    %v461 = vld [vmem:[#allocation2 + $0x130] sm:$0xff]
    %v462 = vld [vmem:[#allocation2 + $0x138] sm:$0xff]
    %v463 = vld [vmem:[#allocation2 + $0x140] sm:$0xff]
    %v464 = vld [vmem:[#allocation2 + $0x148] sm:$0xff]
    %v465 = vld [vmem:[#allocation2 + $0x150] sm:$0xff]
    %v466 = vld [vmem:[#allocation2 + $0x158] sm:$0xff]
    %v467 = vld [vmem:[#allocation2 + $0x160] sm:$0xff]
    %v468 = vld [vmem:[#allocation2 + $0x168] sm:$0xff]
    %v469 = vld [vmem:[#allocation2 + $0x170] sm:$0xff]
    %v470 = vld [vmem:[#allocation2 + $0x178] sm:$0xff]
    %v471 = vld [vmem:[%s3 + $0x2] sm:$0x1]
    %v472 = vlaneseq
    %v473 = vshrl.u32 %v472, 7
    %v474 = vsub.s32 0, %v473
    %v475 = vrot.slane %v471, %v474
    %476 = vmatprep.subr.mxu0 0.0
    %477 = vmatpush1.msra.mxu0 %v455
    %478 = vmatprep.subr.mxu0 0.0
    %479 = vmatpush1.msra.mxu0 %v456
    %480 = vmatprep.subr.mxu0 0.0
    %481 = vmatpush1.msra.mxu0 %v457
    %482 = vmatprep.subr.mxu0 0.0
    %483 = vmatpush1.msra.mxu0 %v458
    %484 = vmatprep.subr.mxu0 0.0
    %485 = vmatpush1.msra.mxu0 %v459
    %486 = vmatprep.subr.mxu0 0.0
    %487 = vmatpush1.msra.mxu0 %v460
    %488 = vmatprep.subr.mxu0 0.0
    %489 = vmatpush1.msra.mxu0 %v461
    %490 = vmatprep.subr.mxu0 0.0
    %491 = vmatpush1.msra.mxu0 %v462
    %492 = vmatprep.subr.mxu0 0.0
    %493 = vmatpush1.msra.mxu0 %v463
    %494 = vmatprep.subr.mxu0 0.0
    %495 = vmatpush1.msra.mxu0 %v464
    %496 = vmatprep.subr.mxu0 0.0
    %497 = vmatpush1.msra.mxu0 %v465
    %498 = vmatprep.subr.mxu0 0.0
    %499 = vmatpush1.msra.mxu0 %v466
    %500 = vmatprep.subr.mxu0 0.0
    %501 = vmatpush1.msra.mxu0 %v467
    %502 = vmatprep.subr.mxu0 0.0
    %503 = vmatpush1.msra.mxu0 %v468
    %504 = vmatprep.subr.mxu0 0.0
    %505 = vmatpush1.msra.mxu0 %v469
    %506 = vmatprep.subr.mxu0 0.0
    %507 = vmatpush1.msra.mxu0 %v470
    %508 = vmatprep.subr.mxu0 0.0
    %509 = vmatpush1.msra.mxu0 0.0
    %510 = vmatprep.subr.mxu0 0.0
    %511 = vmatpush1.msra.mxu0 0.0
    %512 = vmatprep.subr.mxu0 0.0
    %513 = vmatpush1.msra.mxu0 0.0
    %514 = vmatprep.subr.mxu0 0.0
    %515 = vmatpush1.msra.mxu0 0.0
    %516 = vmatprep.subr.mxu0 0.0
    %517 = vmatpush1.msra.mxu0 0.0
    %518 = vmatprep.subr.mxu0 0.0
    %519 = vmatpush1.msra.mxu0 0.0
    %520 = vmatprep.subr.mxu0 0.0
    %521 = vmatpush1.msra.mxu0 0.0
    %522 = vmatprep.subr.mxu0 0.0
    %523 = vmatpush1.msra.mxu0 0.0
    %524 = vmatprep.subr.mxu0 0.0
    %525 = vmatpush1.msra.mxu0 0.0
    %526 = vmatprep.subr.mxu0 0.0
    %527 = vmatpush1.msra.mxu0 0.0
    %528 = vmatprep.subr.mxu0 0.0
    %529 = vmatpush1.msra.mxu0 0.0
    %530 = vmatprep.subr.mxu0 0.0
    %531 = vmatpush1.msra.mxu0 0.0
    %532 = vmatprep.subr.mxu0 0.0
    %533 = vmatpush1.msra.mxu0 0.0
    %534 = vmatprep.subr.mxu0 0.0
    %535 = vmatpush1.msra.mxu0 0.0
    %536 = vmatprep.subr.mxu0 0.0
    %537 = vmatpush1.msra.mxu0 0.0
    %538 = vmatprep.subr.mxu0 0.0
    %539 = vmatpush1.msra.mxu0 0.0
    %540 = vmatprep.mubr.f32.mxu0 0.0
    %541 = vmatmul.mubr.f32.gmra.mrb[0].mxu0 %v273
    %v542 = vpop.f32.mrb[0].mxu0
    %v543 = vadd.f32 %v475, %v542
    %v544 = vpop.f32.mrb[0].mxu0
    %545 = vmatprep.mubr.f32.mxu0 0.0
    %546 = vmatmul.mubr.f32.gmra.mrb[0].mxu0 %v274
    %v547 = vpop.f32.mrb[0].mxu0
    %v548 = vadd.f32 %v475, %v547
    %v549 = vpop.f32.mrb[0].mxu0
    %550 = vmatprep.mubr.f32.mxu0 0.0
    %551 = vmatmul.mubr.f32.gmra.mrb[0].mxu0 %v275
    %v552 = vpop.f32.mrb[0].mxu0
    %v553 = vadd.f32 %v475, %v552
    %v554 = vpop.f32.mrb[0].mxu0
    %555 = vmatprep.mubr.f32.mxu0 0.0
    %556 = vmatmul.mubr.f32.gmra.mrb[0].mxu0 %v276
    %v557 = vpop.f32.mrb[0].mxu0
    %v558 = vadd.f32 %v475, %v557
    %v559 = vpop.f32.mrb[0].mxu0
    %560 = vmatprep.mubr.f32.mxu0 0.0
    %561 = vmatmul.mubr.f32.gmra.mrb[0].mxu0 %v277
    %v562 = vpop.f32.mrb[0].mxu0
    %v563 = vadd.f32 %v475, %v562
    %v564 = vpop.f32.mrb[0].mxu0
    %565 = vmatprep.mubr.f32.mxu0 0.0
    %566 = vmatmul.mubr.f32.gmra.mrb[0].mxu0 %v278
    %v567 = vpop.f32.mrb[0].mxu0
    %v568 = vadd.f32 %v475, %v567
    %v569 = vpop.f32.mrb[0].mxu0
    %570 = vmatprep.mubr.f32.mxu0 0.0
    %571 = vmatmul.mubr.f32.gmra.mrb[0].mxu0 %v279
    %v572 = vpop.f32.mrb[0].mxu0
    %v573 = vadd.f32 %v475, %v572
    %v574 = vpop.f32.mrb[0].mxu0
    %575 = vmatprep.mubr.f32.mxu0 0.0
    %576 = vmatmul.mubr.f32.gmra.mrb[0].mxu0 %v280
    %v577 = vpop.f32.mrb[0].mxu0
    %v578 = vadd.f32 %v475, %v577
    %v579 = vpop.f32.mrb[0].mxu0
    %580 = vmatprep.mubr.f32.mxu0 0.0
    %581 = vmatmul.mubr.f32.gmra.mrb[0].mxu0 %v281
    %v582 = vpop.f32.mrb[0].mxu0
    %v583 = vadd.f32 %v475, %v582
    %v584 = vpop.f32.mrb[0].mxu0
    %585 = vmatprep.mubr.f32.mxu0 0.0
    %586 = vmatmul.mubr.f32.gmra.mrb[0].mxu0 %v282
    %v587 = vpop.f32.mrb[0].mxu0
    %v588 = vadd.f32 %v475, %v587
    %v589 = vpop.f32.mrb[0].mxu0
    %590 = vmatprep.mubr.f32.mxu0 0.0
    %591 = vmatmul.mubr.f32.gmra.mrb[0].mxu0 %v283
    %v592 = vpop.f32.mrb[0].mxu0
    %v593 = vadd.f32 %v475, %v592
    %v594 = vpop.f32.mrb[0].mxu0
    %595 = vmatprep.mubr.f32.mxu0 0.0
    %596 = vmatmul.mubr.f32.gmra.mrb[0].mxu0 %v284
    %v597 = vpop.f32.mrb[0].mxu0
    %v598 = vadd.f32 %v475, %v597
    %v599 = vpop.f32.mrb[0].mxu0
    %600 = vmatprep.mubr.f32.mxu0 0.0
    %601 = vmatmul.mubr.f32.gmra.mrb[0].mxu0 %v285
    %v602 = vpop.f32.mrb[0].mxu0
    %v603 = vadd.f32 %v475, %v602
    %v604 = vpop.f32.mrb[0].mxu0
    %605 = vmatprep.mubr.f32.mxu0 0.0
    %606 = vmatmul.mubr.f32.gmra.mrb[0].mxu0 %v286
    %v607 = vpop.f32.mrb[0].mxu0
    %v608 = vadd.f32 %v475, %v607
    %v609 = vpop.f32.mrb[0].mxu0
    %610 = vmatprep.mubr.f32.mxu0 0.0
    %611 = vmatmul.mubr.f32.gmra.mrb[0].mxu0 %v287
    %v612 = vpop.f32.mrb[0].mxu0
    %v613 = vadd.f32 %v475, %v612
    %v614 = vpop.f32.mrb[0].mxu0
    %615 = vmatprep.mubr.f32.mxu0 0.0
    %616 = vmatmul.mubr.f32.gmra.mrb[0].mxu0 %v288
    %v617 = vpop.f32.mrb[0].mxu0
    %v618 = vadd.f32 %v475, %v617
    %v619 = vpop.f32.mrb[0].mxu0
    %620 = vdwg.mxu0
    %vm621 = vcmask 130048
    %622 = vst.msk [vmem:[%s5] sm:$0xff] %vm621, %v377
    %623 = vst.msk [vmem:[%s5 + $0x8] sm:$0xff] %vm621, %v382
    %624 = vst.msk [vmem:[%s5 + $0x10] sm:$0xff] %vm621, %v387
    %625 = vst.msk [vmem:[%s5 + $0x18] sm:$0xff] %vm621, %v392
    %626 = vst.msk [vmem:[%s5 + $0x20] sm:$0xff] %vm621, %v397
    %627 = vst.msk [vmem:[%s5 + $0x28] sm:$0xff] %vm621, %v402
    %628 = vst.msk [vmem:[%s5 + $0x30] sm:$0xff] %vm621, %v407
    %629 = vst.msk [vmem:[%s5 + $0x38] sm:$0xff] %vm621, %v412
    %630 = vst.msk [vmem:[%s5 + $0x40] sm:$0xff] %vm621, %v417
    %631 = vst.msk [vmem:[%s5 + $0x48] sm:$0xff] %vm621, %v422
    %632 = vst.msk [vmem:[%s5 + $0x50] sm:$0xff] %vm621, %v427
    %633 = vst.msk [vmem:[%s5 + $0x58] sm:$0xff] %vm621, %v432
    %634 = vst.msk [vmem:[%s5 + $0x60] sm:$0xff] %vm621, %v437
    %635 = vst.msk [vmem:[%s5 + $0x68] sm:$0xff] %vm621, %v442
    %636 = vst.msk [vmem:[%s5 + $0x70] sm:$0xff] %vm621, %v447
    %637 = vst.msk [vmem:[%s5 + $0x78] sm:$0xff] %vm621, %v452
    %638 = vst.msk [vmem:[%s6] sm:$0xff] %vm621, %v543
    %639 = vst.msk [vmem:[%s6 + $0x8] sm:$0xff] %vm621, %v548
    %640 = vst.msk [vmem:[%s6 + $0x10] sm:$0xff] %vm621, %v553
    %641 = vst.msk [vmem:[%s6 + $0x18] sm:$0xff] %vm621, %v558
    %642 = vst.msk [vmem:[%s6 + $0x20] sm:$0xff] %vm621, %v563
    %643 = vst.msk [vmem:[%s6 + $0x28] sm:$0xff] %vm621, %v568
    %644 = vst.msk [vmem:[%s6 + $0x30] sm:$0xff] %vm621, %v573
    %645 = vst.msk [vmem:[%s6 + $0x38] sm:$0xff] %vm621, %v578
    %646 = vst.msk [vmem:[%s6 + $0x40] sm:$0xff] %vm621, %v583
    %647 = vst.msk [vmem:[%s6 + $0x48] sm:$0xff] %vm621, %v588
    %648 = vst.msk [vmem:[%s6 + $0x50] sm:$0xff] %vm621, %v593
    %649 = vst.msk [vmem:[%s6 + $0x58] sm:$0xff] %vm621, %v598
    %650 = vst.msk [vmem:[%s6 + $0x60] sm:$0xff] %vm621, %v603
    %651 = vst.msk [vmem:[%s6 + $0x68] sm:$0xff] %vm621, %v608
    %652 = vst.msk [vmem:[%s6 + $0x70] sm:$0xff] %vm621, %v613
    %653 = vst.msk [vmem:[%s6 + $0x78] sm:$0xff] %vm621, %v618
    %v654 = vmul.f32 %v543, 0.5
    %v655 = vmul.f32 %v548, 0.5
    %v656 = vmul.f32 %v553, 0.5
    %v657 = vmul.f32 %v558, 0.5
    %v658 = vmul.f32 %v563, 0.5
    %v659 = vmul.f32 %v568, 0.5
    %v660 = vmul.f32 %v573, 0.5
    %v661 = vmul.f32 %v578, 0.5
    %v662 = vmul.f32 %v583, 0.5
    %v663 = vmul.f32 %v588, 0.5
    %v664 = vmul.f32 %v593, 0.5
    %v665 = vmul.f32 %v598, 0.5
    %v666 = vmul.f32 %v603, 0.5
    %v667 = vmul.f32 %v608, 0.5
    %v668 = vmul.f32 %v613, 0.5
    %v669 = vmul.f32 %v618, 0.5
    %v670 = vmul.f32 %v654, 1.442695
    %v671 = vpow.pop %v670
    %v672 = vmul.f32 %v655, 1.442695
    %v673 = vpow.pop %v672
    %v674 = vmul.f32 %v656, 1.442695
    %v675 = vpow.pop %v674
    %v676 = vmul.f32 %v657, 1.442695
    %v677 = vpow.pop %v676
    %v678 = vmul.f32 %v658, 1.442695
    %v679 = vpow.pop %v678
    %v680 = vmul.f32 %v659, 1.442695
    %v681 = vpow.pop %v680
    %v682 = vmul.f32 %v660, 1.442695
    %v683 = vpow.pop %v682
    %v684 = vmul.f32 %v661, 1.442695
    %v685 = vpow.pop %v684
    %v686 = vmul.f32 %v662, 1.442695
    %v687 = vpow.pop %v686
    %v688 = vmul.f32 %v663, 1.442695
    %v689 = vpow.pop %v688
    %v690 = vmul.f32 %v664, 1.442695
    %v691 = vpow.pop %v690
    %v692 = vmul.f32 %v665, 1.442695
    %v693 = vpow.pop %v692
    %v694 = vmul.f32 %v666, 1.442695
    %v695 = vpow.pop %v694
    %v696 = vmul.f32 %v667, 1.442695
    %v697 = vpow.pop %v696
    %v698 = vmul.f32 %v668, 1.442695
    %v699 = vpow.pop %v698
    %v700 = vmul.f32 %v669, 1.442695
    %v701 = vpow.pop %v700
    %v702 = vmul.f32 %v50, %v671
    %v703 = vmul.f32 %v51, %v673
    %v704 = vmul.f32 %v52, %v675
    %v705 = vmul.f32 %v53, %v677
    %v706 = vmul.f32 %v54, %v679
    %v707 = vmul.f32 %v55, %v681
    %v708 = vmul.f32 %v56, %v683
    %v709 = vmul.f32 %v57, %v685
    %v710 = vmul.f32 %v58, %v687
    %v711 = vmul.f32 %v59, %v689
    %v712 = vmul.f32 %v60, %v691
    %v713 = vmul.f32 %v61, %v693
    %v714 = vmul.f32 %v62, %v695
    %v715 = vmul.f32 %v63, %v697
    %v716 = vmul.f32 %v64, %v699
    %v717 = vmul.f32 %v65, %v701
    %v718 = vadd.f32 %v377, %v702
    %v719 = vadd.f32 %v382, %v703
    %v720 = vadd.f32 %v387, %v704
    %v721 = vadd.f32 %v392, %v705
    %v722 = vadd.f32 %v397, %v706
    %v723 = vadd.f32 %v402, %v707
    %v724 = vadd.f32 %v407, %v708
    %v725 = vadd.f32 %v412, %v709
    %v726 = vadd.f32 %v417, %v710
    %v727 = vadd.f32 %v422, %v711
    %v728 = vadd.f32 %v427, %v712
    %v729 = vadd.f32 %v432, %v713
    %v730 = vadd.f32 %v437, %v714
    %v731 = vadd.f32 %v442, %v715
    %v732 = vadd.f32 %v447, %v716
    %v733 = vadd.f32 %v452, %v717
    %v734 = vld [vmem:[#allocation2 + $0x180] sm:$0xff]
    %v735 = vld [vmem:[#allocation2 + $0x188] sm:$0xff]
    %v736 = vld [vmem:[%s3 + $0x3] sm:$0x1]
    %v737 = vlaneseq
    %v738 = vshrl.u32 %v737, 7
    %v739 = vsub.s32 0, %v738
    %v740 = vrot.slane %v736, %v739
    %v742 = vsel %vm621, %v718, 0
    %v745 = vsel %vm621, %v719, 0
    %v748 = vsel %vm621, %v720, 0
    %v751 = vsel %vm621, %v721, 0
    %v754 = vsel %vm621, %v722, 0
    %v757 = vsel %vm621, %v723, 0
    %v760 = vsel %vm621, %v724, 0
    %v763 = vsel %vm621, %v725, 0
    %v766 = vsel %vm621, %v726, 0
    %v769 = vsel %vm621, %v727, 0
    %v772 = vsel %vm621, %v728, 0
    %v775 = vsel %vm621, %v729, 0
    %v778 = vsel %vm621, %v730, 0
    %v781 = vsel %vm621, %v731, 0
    %v784 = vsel %vm621, %v732, 0
    %v787 = vsel %vm621, %v733, 0
    %789 = vmatprep.subr.mxu0 0.0
    %790 = vmatpush1.msra.mxu0 %v734
    %791 = vmatprep.subr.mxu0 0.0
    %792 = vmatpush1.msra.mxu0 %v735
    %793 = vmatprep.subr.mxu0 0.0
    %794 = vmatpush1.msra.mxu0 0.0
    %795 = vmatprep.subr.mxu0 0.0
    %796 = vmatpush1.msra.mxu0 0.0
    %797 = vmatprep.subr.mxu0 0.0
    %798 = vmatpush1.msra.mxu0 0.0
    %799 = vmatprep.subr.mxu0 0.0
    %800 = vmatpush1.msra.mxu0 0.0
    %801 = vmatprep.subr.mxu0 0.0
    %802 = vmatpush1.msra.mxu0 0.0
    %803 = vmatprep.subr.mxu0 0.0
    %804 = vmatpush1.msra.mxu0 0.0
    %805 = vmatprep.subr.mxu0 0.0
    %806 = vmatpush1.msra.mxu0 0.0
    %807 = vmatprep.subr.mxu0 0.0
    %808 = vmatpush1.msra.mxu0 0.0
    %809 = vmatprep.subr.mxu0 0.0
    %810 = vmatpush1.msra.mxu0 0.0
    %811 = vmatprep.subr.mxu0 0.0
    %812 = vmatpush1.msra.mxu0 0.0
    %813 = vmatprep.subr.mxu0 0.0
    %814 = vmatpush1.msra.mxu0 0.0
    %815 = vmatprep.subr.mxu0 0.0
    %816 = vmatpush1.msra.mxu0 0.0
    %817 = vmatprep.subr.mxu0 0.0
    %818 = vmatpush1.msra.mxu0 0.0
    %819 = vmatprep.subr.mxu0 0.0
    %820 = vmatpush1.msra.mxu0 0.0
    %821 = vmatprep.subr.mxu0 0.0
    %822 = vmatpush1.msra.mxu0 0.0
    %823 = vmatprep.subr.mxu0 0.0
    %824 = vmatpush1.msra.mxu0 0.0
    %825 = vmatprep.subr.mxu0 0.0
    %826 = vmatpush1.msra.mxu0 0.0
    %827 = vmatprep.subr.mxu0 0.0
    %828 = vmatpush1.msra.mxu0 0.0
    %829 = vmatprep.subr.mxu0 0.0
    %830 = vmatpush1.msra.mxu0 0.0
    %831 = vmatprep.subr.mxu0 0.0
    %832 = vmatpush1.msra.mxu0 0.0
    %833 = vmatprep.subr.mxu0 0.0
    %834 = vmatpush1.msra.mxu0 0.0
    %835 = vmatprep.subr.mxu0 0.0
    %836 = vmatpush1.msra.mxu0 0.0
    %837 = vmatprep.subr.mxu0 0.0
    %838 = vmatpush1.msra.mxu0 0.0
    %839 = vmatprep.subr.mxu0 0.0
    %840 = vmatpush1.msra.mxu0 0.0
    %841 = vmatprep.subr.mxu0 0.0
    %842 = vmatpush1.msra.mxu0 0.0
    %843 = vmatprep.subr.mxu0 0.0
    %844 = vmatpush1.msra.mxu0 0.0
    %845 = vmatprep.subr.mxu0 0.0
    %846 = vmatpush1.msra.mxu0 0.0
    %847 = vmatprep.subr.mxu0 0.0
    %848 = vmatpush1.msra.mxu0 0.0
    %849 = vmatprep.subr.mxu0 0.0
    %850 = vmatpush1.msra.mxu0 0.0
    %851 = vmatprep.subr.mxu0 0.0
    %852 = vmatpush1.msra.mxu0 0.0
    %853 = vmatprep.mubr.f32.mxu0 0.0
    %854 = vmatmul.mubr.f32.gmra.mrb[0].mxu0 %v742
    %v855 = vpop.f32.mrb[0].mxu0
    %v856 = vadd.f32 %v740, %v855
    %v857 = vpop.f32.mrb[0].mxu0
    %858 = vmatprep.mubr.f32.mxu0 0.0
    %859 = vmatmul.mubr.f32.gmra.mrb[0].mxu0 %v745
    %v860 = vpop.f32.mrb[0].mxu0
    %v861 = vadd.f32 %v740, %v860
    %v862 = vpop.f32.mrb[0].mxu0
    %863 = vmatprep.mubr.f32.mxu0 0.0
    %864 = vmatmul.mubr.f32.gmra.mrb[0].mxu0 %v748
    %v865 = vpop.f32.mrb[0].mxu0
    %v866 = vadd.f32 %v740, %v865
    %v867 = vpop.f32.mrb[0].mxu0
    %868 = vmatprep.mubr.f32.mxu0 0.0
    %869 = vmatmul.mubr.f32.gmra.mrb[0].mxu0 %v751
    %v870 = vpop.f32.mrb[0].mxu0
    %v871 = vadd.f32 %v740, %v870
    %v872 = vpop.f32.mrb[0].mxu0
    %873 = vmatprep.mubr.f32.mxu0 0.0
    %874 = vmatmul.mubr.f32.gmra.mrb[0].mxu0 %v754
    %v875 = vpop.f32.mrb[0].mxu0
    %v876 = vadd.f32 %v740, %v875
    %v877 = vpop.f32.mrb[0].mxu0
    %878 = vmatprep.mubr.f32.mxu0 0.0
    %879 = vmatmul.mubr.f32.gmra.mrb[0].mxu0 %v757
    %v880 = vpop.f32.mrb[0].mxu0
    %v881 = vadd.f32 %v740, %v880
    %v882 = vpop.f32.mrb[0].mxu0
    %883 = vmatprep.mubr.f32.mxu0 0.0
    %884 = vmatmul.mubr.f32.gmra.mrb[0].mxu0 %v760
    %v885 = vpop.f32.mrb[0].mxu0
    %v886 = vadd.f32 %v740, %v885
    %v887 = vpop.f32.mrb[0].mxu0
    %888 = vmatprep.mubr.f32.mxu0 0.0
    %889 = vmatmul.mubr.f32.gmra.mrb[0].mxu0 %v763
    %v890 = vpop.f32.mrb[0].mxu0
    %v891 = vadd.f32 %v740, %v890
    %v892 = vpop.f32.mrb[0].mxu0
    %893 = vmatprep.mubr.f32.mxu0 0.0
    %894 = vmatmul.mubr.f32.gmra.mrb[0].mxu0 %v766
    %v895 = vpop.f32.mrb[0].mxu0
    %v896 = vadd.f32 %v740, %v895
    %v897 = vpop.f32.mrb[0].mxu0
    %898 = vmatprep.mubr.f32.mxu0 0.0
    %899 = vmatmul.mubr.f32.gmra.mrb[0].mxu0 %v769
    %v900 = vpop.f32.mrb[0].mxu0
    %v901 = vadd.f32 %v740, %v900
    %v902 = vpop.f32.mrb[0].mxu0
    %903 = vmatprep.mubr.f32.mxu0 0.0
    %904 = vmatmul.mubr.f32.gmra.mrb[0].mxu0 %v772
    %v905 = vpop.f32.mrb[0].mxu0
    %v906 = vadd.f32 %v740, %v905
    %v907 = vpop.f32.mrb[0].mxu0
    %908 = vmatprep.mubr.f32.mxu0 0.0
    %909 = vmatmul.mubr.f32.gmra.mrb[0].mxu0 %v775
    %v910 = vpop.f32.mrb[0].mxu0
    %v911 = vadd.f32 %v740, %v910
    %v912 = vpop.f32.mrb[0].mxu0
    %913 = vmatprep.mubr.f32.mxu0 0.0
    %914 = vmatmul.mubr.f32.gmra.mrb[0].mxu0 %v778
    %v915 = vpop.f32.mrb[0].mxu0
    %v916 = vadd.f32 %v740, %v915
    %v917 = vpop.f32.mrb[0].mxu0
    %918 = vmatprep.mubr.f32.mxu0 0.0
    %919 = vmatmul.mubr.f32.gmra.mrb[0].mxu0 %v781
    %v920 = vpop.f32.mrb[0].mxu0
    %v921 = vadd.f32 %v740, %v920
    %v922 = vpop.f32.mrb[0].mxu0
    %923 = vmatprep.mubr.f32.mxu0 0.0
    %924 = vmatmul.mubr.f32.gmra.mrb[0].mxu0 %v784
    %v925 = vpop.f32.mrb[0].mxu0
    %v926 = vadd.f32 %v740, %v925
    %v927 = vpop.f32.mrb[0].mxu0
    %928 = vmatprep.mubr.f32.mxu0 0.0
    %929 = vmatmul.mubr.f32.gmra.mrb[0].mxu0 %v787
    %v930 = vpop.f32.mrb[0].mxu0
    %v931 = vadd.f32 %v740, %v930
    %v932 = vpop.f32.mrb[0].mxu0
    %933 = vdwg.mxu0
    %v934 = vmax.f32 %v856, %v876
    %v935 = vmax.f32 %v861, %v881
    %v936 = vmax.f32 %v866, %v886
    %v937 = vmax.f32 %v871, %v891
    %v938 = vmax.f32 %v934, %v896
    %v939 = vmax.f32 %v935, %v901
    %v940 = vmax.f32 %v936, %v906
    %v941 = vmax.f32 %v937, %v911
    %v942 = vmax.f32 %v938, %v916
    %v943 = vmax.f32 %v939, %v921
    %v944 = vmax.f32 %v940, %v926
    %v945 = vmax.f32 %v941, %v931
    %v946 = vmax.f32 %v942, %v943
    %v947 = vmax.f32 %v944, %v945
    %v948 = vmax.f32 %v946, %v947
    %v949 = vrot.slane %v948, 4
    %v950 = vmax.f32 %v948, %v949
    %v951 = vrot.slane %v950, 2
    %v952 = vmax.f32 %v950, %v951
    %v953 = vrot.slane %v952, 1
    %v954 = vmax.f32 %v952, %v953
    %v955 = vsub.f32 %v856, %v954
    %v956 = vsub.f32 %v861, %v954
    %v957 = vsub.f32 %v866, %v954
    %v958 = vsub.f32 %v871, %v954
    %v959 = vsub.f32 %v876, %v954
    %v960 = vsub.f32 %v881, %v954
    %v961 = vsub.f32 %v886, %v954
    %v962 = vsub.f32 %v891, %v954
    %v963 = vsub.f32 %v896, %v954
    %v964 = vsub.f32 %v901, %v954
    %v965 = vsub.f32 %v906, %v954
    %v966 = vsub.f32 %v911, %v954
    %v967 = vsub.f32 %v916, %v954
    %v968 = vsub.f32 %v921, %v954
    %v969 = vsub.f32 %v926, %v954
    %v970 = vsub.f32 %v931, %v954
    %v971 = vmul.f32 %v955, 1.442695
    %v972 = vpow.pop %v971
    %v973 = vmul.f32 %v956, 1.442695
    %v974 = vpow.pop %v973
    %v975 = vmul.f32 %v957, 1.442695
    %v976 = vpow.pop %v975
    %v977 = vmul.f32 %v958, 1.442695
    %v978 = vpow.pop %v977
    %v979 = vmul.f32 %v959, 1.442695
    %v980 = vpow.pop %v979
    %v981 = vmul.f32 %v960, 1.442695
    %v982 = vpow.pop %v981
    %v983 = vmul.f32 %v961, 1.442695
    %v984 = vpow.pop %v983
    %v985 = vmul.f32 %v962, 1.442695
    %v986 = vpow.pop %v985
    %v987 = vmul.f32 %v963, 1.442695
    %v988 = vpow.pop %v987
    %v989 = vmul.f32 %v964, 1.442695
    %v990 = vpow.pop %v989
    %v991 = vmul.f32 %v965, 1.442695
    %v992 = vpow.pop %v991
    %v993 = vmul.f32 %v966, 1.442695
    %v994 = vpow.pop %v993
    %v995 = vmul.f32 %v967, 1.442695
    %v996 = vpow.pop %v995
    %v997 = vmul.f32 %v968, 1.442695
    %v998 = vpow.pop %v997
    %v999 = vmul.f32 %v969, 1.442695
    %v1000 = vpow.pop %v999
    %v1001 = vmul.f32 %v970, 1.442695
    %v1002 = vpow.pop %v1001
    %v1003 = vadd.f32 %v972, %v974
    %v1004 = vadd.f32 %v1003, %v976
    %v1005 = vadd.f32 %v1004, %v978
    %v1006 = vadd.f32 %v1005, %v980
    %v1007 = vadd.f32 %v1006, %v982
    %v1008 = vadd.f32 %v1007, %v984
    %v1009 = vadd.f32 %v1008, %v986
    %v1010 = vadd.f32 %v1009, %v988
    %v1011 = vadd.f32 %v1010, %v990
    %v1012 = vadd.f32 %v1011, %v992
    %v1013 = vadd.f32 %v1012, %v994
    %v1014 = vadd.f32 %v1013, %v996
    %v1015 = vadd.f32 %v1014, %v998
    %v1016 = vadd.f32 %v1015, %v1000
    %v1017 = vadd.f32 %v1016, %v1002
    %v1018 = vrot.slane %v1017, 4
    %v1019 = vadd.f32 %v1017, %v1018
    %v1020 = vrot.slane %v1019, 2
    %v1021 = vadd.f32 %v1019, %v1020
    %v1022 = vrot.slane %v1021, 1
    %v1023 = vadd.f32 %v1021, %v1022
    %v1024 = vrcp.pop %v1023
    %v1025 = vmul.f32 %v972, %v1024
    %v1026 = vmul.f32 %v974, %v1024
    %v1027 = vmul.f32 %v976, %v1024
    %v1028 = vmul.f32 %v978, %v1024
    %v1029 = vmul.f32 %v980, %v1024
    %v1030 = vmul.f32 %v982, %v1024
    %v1031 = vmul.f32 %v984, %v1024
    %v1032 = vmul.f32 %v986, %v1024
    %v1033 = vmul.f32 %v988, %v1024
    %v1034 = vmul.f32 %v990, %v1024
    %v1035 = vmul.f32 %v992, %v1024
    %v1036 = vmul.f32 %v994, %v1024
    %v1037 = vmul.f32 %v996, %v1024
    %v1038 = vmul.f32 %v998, %v1024
    %v1039 = vmul.f32 %v1000, %v1024
    %v1040 = vmul.f32 %v1002, %v1024
    %v1041 = vld [vmem:[#allocation2 + $0x200] sm:$0xff]
    %v1042 = vld [vmem:[#allocation2 + $0x208] sm:$0xff]
    %v1043 = vld [vmem:[#allocation2 + $0x210] sm:$0xff]
    %v1044 = vld [vmem:[#allocation2 + $0x218] sm:$0xff]
    %v1045 = vld [vmem:[#allocation2 + $0x220] sm:$0xff]
    %v1046 = vld [vmem:[#allocation2 + $0x228] sm:$0xff]
    %v1047 = vld [vmem:[#allocation2 + $0x230] sm:$0xff]
    %v1048 = vld [vmem:[#allocation2 + $0x238] sm:$0xff]
    %v1049 = vld [vmem:[#allocation2 + $0x240] sm:$0xff]
    %v1050 = vld [vmem:[#allocation2 + $0x248] sm:$0xff]
    %v1051 = vld [vmem:[#allocation2 + $0x250] sm:$0xff]
    %v1052 = vld [vmem:[#allocation2 + $0x258] sm:$0xff]
    %v1053 = vld [vmem:[#allocation2 + $0x260] sm:$0xff]
    %v1054 = vld [vmem:[#allocation2 + $0x268] sm:$0xff]
    %v1055 = vld [vmem:[#allocation2 + $0x270] sm:$0xff]
    %v1056 = vld [vmem:[#allocation2 + $0x278] sm:$0xff]
    %v1057 = vld [vmem:[%s3 + $0x4] sm:$0x1]
    %v1058 = vlaneseq
    %v1059 = vshrl.u32 %v1058, 7
    %v1060 = vsub.s32 0, %v1059
    %v1061 = vrot.slane %v1057, %v1060
    %1062 = vmatprep.subr.mxu0 0.0
    %1063 = vmatpush1.msra.mxu0 %v1041
    %1064 = vmatprep.subr.mxu0 0.0
    %1065 = vmatpush1.msra.mxu0 %v1042
    %1066 = vmatprep.subr.mxu0 0.0
    %1067 = vmatpush1.msra.mxu0 %v1043
    %1068 = vmatprep.subr.mxu0 0.0
    %1069 = vmatpush1.msra.mxu0 %v1044
    %1070 = vmatprep.subr.mxu0 0.0
    %1071 = vmatpush1.msra.mxu0 %v1045
    %1072 = vmatprep.subr.mxu0 0.0
    %1073 = vmatpush1.msra.mxu0 %v1046
    %1074 = vmatprep.subr.mxu0 0.0
    %1075 = vmatpush1.msra.mxu0 %v1047
    %1076 = vmatprep.subr.mxu0 0.0
    %1077 = vmatpush1.msra.mxu0 %v1048
    %1078 = vmatprep.subr.mxu0 0.0
    %1079 = vmatpush1.msra.mxu0 %v1049
    %1080 = vmatprep.subr.mxu0 0.0
    %1081 = vmatpush1.msra.mxu0 %v1050
    %1082 = vmatprep.subr.mxu0 0.0
    %1083 = vmatpush1.msra.mxu0 %v1051
    %1084 = vmatprep.subr.mxu0 0.0
    %1085 = vmatpush1.msra.mxu0 %v1052
    %1086 = vmatprep.subr.mxu0 0.0
    %1087 = vmatpush1.msra.mxu0 %v1053
    %1088 = vmatprep.subr.mxu0 0.0
    %1089 = vmatpush1.msra.mxu0 %v1054
    %1090 = vmatprep.subr.mxu0 0.0
    %1091 = vmatpush1.msra.mxu0 %v1055
    %1092 = vmatprep.subr.mxu0 0.0
    %1093 = vmatpush1.msra.mxu0 %v1056
    %1094 = vmatprep.subr.mxu0 0.0
    %1095 = vmatpush1.msra.mxu0 0.0
    %1096 = vmatprep.subr.mxu0 0.0
    %1097 = vmatpush1.msra.mxu0 0.0
    %1098 = vmatprep.subr.mxu0 0.0
    %1099 = vmatpush1.msra.mxu0 0.0
    %1100 = vmatprep.subr.mxu0 0.0
    %1101 = vmatpush1.msra.mxu0 0.0
    %1102 = vmatprep.subr.mxu0 0.0
    %1103 = vmatpush1.msra.mxu0 0.0
    %1104 = vmatprep.subr.mxu0 0.0
    %1105 = vmatpush1.msra.mxu0 0.0
    %1106 = vmatprep.subr.mxu0 0.0
    %1107 = vmatpush1.msra.mxu0 0.0
    %1108 = vmatprep.subr.mxu0 0.0
    %1109 = vmatpush1.msra.mxu0 0.0
    %1110 = vmatprep.subr.mxu0 0.0
    %1111 = vmatpush1.msra.mxu0 0.0
    %1112 = vmatprep.subr.mxu0 0.0
    %1113 = vmatpush1.msra.mxu0 0.0
    %1114 = vmatprep.subr.mxu0 0.0
    %1115 = vmatpush1.msra.mxu0 0.0
    %1116 = vmatprep.subr.mxu0 0.0
    %1117 = vmatpush1.msra.mxu0 0.0
    %1118 = vmatprep.subr.mxu0 0.0
    %1119 = vmatpush1.msra.mxu0 0.0
    %1120 = vmatprep.subr.mxu0 0.0
    %1121 = vmatpush1.msra.mxu0 0.0
    %1122 = vmatprep.subr.mxu0 0.0
    %1123 = vmatpush1.msra.mxu0 0.0
    %1124 = vmatprep.subr.mxu0 0.0
    %1125 = vmatpush1.msra.mxu0 0.0
    %1126 = vmatprep.mubr.f32.mxu0 0.0
    %1127 = vmatmul.mubr.f32.gmra.mrb[0].mxu0 %v1025
    %v1128 = vpop.f32.mrb[0].mxu0
    %v1129 = vadd.f32 %v1061, %v1128
    %v1130 = vpop.f32.mrb[0].mxu0
    %1131 = vmatprep.mubr.f32.mxu0 0.0
    %1132 = vmatmul.mubr.f32.gmra.mrb[0].mxu0 %v1026
    %v1133 = vpop.f32.mrb[0].mxu0
    %v1134 = vadd.f32 %v1061, %v1133
    %v1135 = vpop.f32.mrb[0].mxu0
    %1136 = vmatprep.mubr.f32.mxu0 0.0
    %1137 = vmatmul.mubr.f32.gmra.mrb[0].mxu0 %v1027
    %v1138 = vpop.f32.mrb[0].mxu0
    %v1139 = vadd.f32 %v1061, %v1138
    %v1140 = vpop.f32.mrb[0].mxu0
    %1141 = vmatprep.mubr.f32.mxu0 0.0
    %1142 = vmatmul.mubr.f32.gmra.mrb[0].mxu0 %v1028
    %v1143 = vpop.f32.mrb[0].mxu0
    %v1144 = vadd.f32 %v1061, %v1143
    %v1145 = vpop.f32.mrb[0].mxu0
    %1146 = vmatprep.mubr.f32.mxu0 0.0
    %1147 = vmatmul.mubr.f32.gmra.mrb[0].mxu0 %v1029
    %v1148 = vpop.f32.mrb[0].mxu0
    %v1149 = vadd.f32 %v1061, %v1148
    %v1150 = vpop.f32.mrb[0].mxu0
    %1151 = vmatprep.mubr.f32.mxu0 0.0
    %1152 = vmatmul.mubr.f32.gmra.mrb[0].mxu0 %v1030
    %v1153 = vpop.f32.mrb[0].mxu0
    %v1154 = vadd.f32 %v1061, %v1153
    %v1155 = vpop.f32.mrb[0].mxu0
    %1156 = vmatprep.mubr.f32.mxu0 0.0
    %1157 = vmatmul.mubr.f32.gmra.mrb[0].mxu0 %v1031
    %v1158 = vpop.f32.mrb[0].mxu0
    %v1159 = vadd.f32 %v1061, %v1158
    %v1160 = vpop.f32.mrb[0].mxu0
    %1161 = vmatprep.mubr.f32.mxu0 0.0
    %1162 = vmatmul.mubr.f32.gmra.mrb[0].mxu0 %v1032
    %v1163 = vpop.f32.mrb[0].mxu0
    %v1164 = vadd.f32 %v1061, %v1163
    %v1165 = vpop.f32.mrb[0].mxu0
    %1166 = vmatprep.mubr.f32.mxu0 0.0
    %1167 = vmatmul.mubr.f32.gmra.mrb[0].mxu0 %v1033
    %v1168 = vpop.f32.mrb[0].mxu0
    %v1169 = vadd.f32 %v1061, %v1168
    %v1170 = vpop.f32.mrb[0].mxu0
    %1171 = vmatprep.mubr.f32.mxu0 0.0
    %1172 = vmatmul.mubr.f32.gmra.mrb[0].mxu0 %v1034
    %v1173 = vpop.f32.mrb[0].mxu0
    %v1174 = vadd.f32 %v1061, %v1173
    %v1175 = vpop.f32.mrb[0].mxu0
    %1176 = vmatprep.mubr.f32.mxu0 0.0
    %1177 = vmatmul.mubr.f32.gmra.mrb[0].mxu0 %v1035
    %v1178 = vpop.f32.mrb[0].mxu0
    %v1179 = vadd.f32 %v1061, %v1178
    %v1180 = vpop.f32.mrb[0].mxu0
    %1181 = vmatprep.mubr.f32.mxu0 0.0
    %1182 = vmatmul.mubr.f32.gmra.mrb[0].mxu0 %v1036
    %v1183 = vpop.f32.mrb[0].mxu0
    %v1184 = vadd.f32 %v1061, %v1183
    %v1185 = vpop.f32.mrb[0].mxu0
    %1186 = vmatprep.mubr.f32.mxu0 0.0
    %1187 = vmatmul.mubr.f32.gmra.mrb[0].mxu0 %v1037
    %v1188 = vpop.f32.mrb[0].mxu0
    %v1189 = vadd.f32 %v1061, %v1188
    %v1190 = vpop.f32.mrb[0].mxu0
    %1191 = vmatprep.mubr.f32.mxu0 0.0
    %1192 = vmatmul.mubr.f32.gmra.mrb[0].mxu0 %v1038
    %v1193 = vpop.f32.mrb[0].mxu0
    %v1194 = vadd.f32 %v1061, %v1193
    %v1195 = vpop.f32.mrb[0].mxu0
    %1196 = vmatprep.mubr.f32.mxu0 0.0
    %1197 = vmatmul.mubr.f32.gmra.mrb[0].mxu0 %v1039
    %v1198 = vpop.f32.mrb[0].mxu0
    %v1199 = vadd.f32 %v1061, %v1198
    %v1200 = vpop.f32.mrb[0].mxu0
    %1201 = vmatprep.mubr.f32.mxu0 0.0
    %1202 = vmatmul.mubr.f32.gmra.mrb[0].mxu0 %v1040
    %v1203 = vpop.f32.mrb[0].mxu0
    %v1204 = vadd.f32 %v1061, %v1203
    %v1205 = vpop.f32.mrb[0].mxu0
    %1206 = vdwg.mxu0
    %v1207 = vmax.f32 %v1129, 0.0
    %v1208 = vmax.f32 %v1134, 0.0
    %v1209 = vmax.f32 %v1139, 0.0
    %v1210 = vmax.f32 %v1144, 0.0
    %v1211 = vmax.f32 %v1149, 0.0
    %v1212 = vmax.f32 %v1154, 0.0
    %v1213 = vmax.f32 %v1159, 0.0
    %v1214 = vmax.f32 %v1164, 0.0
    %v1215 = vmax.f32 %v1169, 0.0
    %v1216 = vmax.f32 %v1174, 0.0
    %v1217 = vmax.f32 %v1179, 0.0
    %v1218 = vmax.f32 %v1184, 0.0
    %v1219 = vmax.f32 %v1189, 0.0
    %v1220 = vmax.f32 %v1194, 0.0
    %v1221 = vmax.f32 %v1199, 0.0
    %v1222 = vmax.f32 %v1204, 0.0
    %v1223 = vld [vmem:[#allocation2 + $0x280] sm:$0xff]
    %v1224 = vld [vmem:[#allocation2 + $0x288] sm:$0xff]
    %v1225 = vld [vmem:[#allocation2 + $0x290] sm:$0xff]
    %v1226 = vld [vmem:[#allocation2 + $0x298] sm:$0xff]
    %v1227 = vld [vmem:[#allocation2 + $0x2a0] sm:$0xff]
    %v1228 = vld [vmem:[#allocation2 + $0x2a8] sm:$0xff]
    %v1229 = vld [vmem:[#allocation2 + $0x2b0] sm:$0xff]
    %v1230 = vld [vmem:[#allocation2 + $0x2b8] sm:$0xff]
    %v1231 = vld [vmem:[#allocation2 + $0x2c0] sm:$0xff]
    %v1232 = vld [vmem:[#allocation2 + $0x2c8] sm:$0xff]
    %v1233 = vld [vmem:[#allocation2 + $0x2d0] sm:$0xff]
    %v1234 = vld [vmem:[#allocation2 + $0x2d8] sm:$0xff]
    %v1235 = vld [vmem:[#allocation2 + $0x2e0] sm:$0xff]
    %v1236 = vld [vmem:[#allocation2 + $0x2e8] sm:$0xff]
    %v1237 = vld [vmem:[#allocation2 + $0x2f0] sm:$0xff]
    %v1238 = vld [vmem:[#allocation2 + $0x2f8] sm:$0xff]
    %v1239 = vld [vmem:[%s3 + $0x5] sm:$0x1]
    %v1240 = vlaneseq
    %v1241 = vshrl.u32 %v1240, 7
    %v1242 = vsub.s32 0, %v1241
    %v1243 = vrot.slane %v1239, %v1242
    %1244 = vmatprep.subr.mxu0 0.0
    %1245 = vmatpush1.msra.mxu0 %v1223
    %1246 = vmatprep.subr.mxu0 0.0
    %1247 = vmatpush1.msra.mxu0 %v1224
    %1248 = vmatprep.subr.mxu0 0.0
    %1249 = vmatpush1.msra.mxu0 %v1225
    %1250 = vmatprep.subr.mxu0 0.0
    %1251 = vmatpush1.msra.mxu0 %v1226
    %1252 = vmatprep.subr.mxu0 0.0
    %1253 = vmatpush1.msra.mxu0 %v1227
    %1254 = vmatprep.subr.mxu0 0.0
    %1255 = vmatpush1.msra.mxu0 %v1228
    %1256 = vmatprep.subr.mxu0 0.0
    %1257 = vmatpush1.msra.mxu0 %v1229
    %1258 = vmatprep.subr.mxu0 0.0
    %1259 = vmatpush1.msra.mxu0 %v1230
    %1260 = vmatprep.subr.mxu0 0.0
    %1261 = vmatpush1.msra.mxu0 %v1231
    %1262 = vmatprep.subr.mxu0 0.0
    %1263 = vmatpush1.msra.mxu0 %v1232
    %1264 = vmatprep.subr.mxu0 0.0
    %1265 = vmatpush1.msra.mxu0 %v1233
    %1266 = vmatprep.subr.mxu0 0.0
    %1267 = vmatpush1.msra.mxu0 %v1234
    %1268 = vmatprep.subr.mxu0 0.0
    %1269 = vmatpush1.msra.mxu0 %v1235
    %1270 = vmatprep.subr.mxu0 0.0
    %1271 = vmatpush1.msra.mxu0 %v1236
    %1272 = vmatprep.subr.mxu0 0.0
    %1273 = vmatpush1.msra.mxu0 %v1237
    %1274 = vmatprep.subr.mxu0 0.0
    %1275 = vmatpush1.msra.mxu0 %v1238
    %1276 = vmatprep.subr.mxu0 0.0
    %1277 = vmatpush1.msra.mxu0 0.0
    %1278 = vmatprep.subr.mxu0 0.0
    %1279 = vmatpush1.msra.mxu0 0.0
    %1280 = vmatprep.subr.mxu0 0.0
    %1281 = vmatpush1.msra.mxu0 0.0
    %1282 = vmatprep.subr.mxu0 0.0
    %1283 = vmatpush1.msra.mxu0 0.0
    %1284 = vmatprep.subr.mxu0 0.0
    %1285 = vmatpush1.msra.mxu0 0.0
    %1286 = vmatprep.subr.mxu0 0.0
    %1287 = vmatpush1.msra.mxu0 0.0
    %1288 = vmatprep.subr.mxu0 0.0
    %1289 = vmatpush1.msra.mxu0 0.0
    %1290 = vmatprep.subr.mxu0 0.0
    %1291 = vmatpush1.msra.mxu0 0.0
    %1292 = vmatprep.subr.mxu0 0.0
    %1293 = vmatpush1.msra.mxu0 0.0
    %1294 = vmatprep.subr.mxu0 0.0
    %1295 = vmatpush1.msra.mxu0 0.0
    %1296 = vmatprep.subr.mxu0 0.0
    %1297 = vmatpush1.msra.mxu0 0.0
    %1298 = vmatprep.subr.mxu0 0.0
    %1299 = vmatpush1.msra.mxu0 0.0
    %1300 = vmatprep.subr.mxu0 0.0
    %1301 = vmatpush1.msra.mxu0 0.0
    %1302 = vmatprep.subr.mxu0 0.0
    %1303 = vmatpush1.msra.mxu0 0.0
    %1304 = vmatprep.subr.mxu0 0.0
    %1305 = vmatpush1.msra.mxu0 0.0
    %1306 = vmatprep.subr.mxu0 0.0
    %1307 = vmatpush1.msra.mxu0 0.0
    %1308 = vmatprep.mubr.f32.mxu0 0.0
    %1309 = vmatmul.mubr.f32.gmra.mrb[0].mxu0 %v1207
    %v1310 = vpop.f32.mrb[0].mxu0
    %v1311 = vadd.f32 %v1243, %v1310
    %v1312 = vpop.f32.mrb[0].mxu0
    %1313 = vmatprep.mubr.f32.mxu0 0.0
    %1314 = vmatmul.mubr.f32.gmra.mrb[0].mxu0 %v1208
    %v1315 = vpop.f32.mrb[0].mxu0
    %v1316 = vadd.f32 %v1243, %v1315
    %v1317 = vpop.f32.mrb[0].mxu0
    %1318 = vmatprep.mubr.f32.mxu0 0.0
    %1319 = vmatmul.mubr.f32.gmra.mrb[0].mxu0 %v1209
    %v1320 = vpop.f32.mrb[0].mxu0
    %v1321 = vadd.f32 %v1243, %v1320
    %v1322 = vpop.f32.mrb[0].mxu0
    %1323 = vmatprep.mubr.f32.mxu0 0.0
    %1324 = vmatmul.mubr.f32.gmra.mrb[0].mxu0 %v1210
    %v1325 = vpop.f32.mrb[0].mxu0
    %v1326 = vadd.f32 %v1243, %v1325
    %v1327 = vpop.f32.mrb[0].mxu0
    %1328 = vmatprep.mubr.f32.mxu0 0.0
    %1329 = vmatmul.mubr.f32.gmra.mrb[0].mxu0 %v1211
    %v1330 = vpop.f32.mrb[0].mxu0
    %v1331 = vadd.f32 %v1243, %v1330
    %v1332 = vpop.f32.mrb[0].mxu0
    %1333 = vmatprep.mubr.f32.mxu0 0.0
    %1334 = vmatmul.mubr.f32.gmra.mrb[0].mxu0 %v1212
    %v1335 = vpop.f32.mrb[0].mxu0
    %v1336 = vadd.f32 %v1243, %v1335
    %v1337 = vpop.f32.mrb[0].mxu0
    %1338 = vmatprep.mubr.f32.mxu0 0.0
    %1339 = vmatmul.mubr.f32.gmra.mrb[0].mxu0 %v1213
    %v1340 = vpop.f32.mrb[0].mxu0
    %v1341 = vadd.f32 %v1243, %v1340
    %v1342 = vpop.f32.mrb[0].mxu0
    %1343 = vmatprep.mubr.f32.mxu0 0.0
    %1344 = vmatmul.mubr.f32.gmra.mrb[0].mxu0 %v1214
    %v1345 = vpop.f32.mrb[0].mxu0
    %v1346 = vadd.f32 %v1243, %v1345
    %v1347 = vpop.f32.mrb[0].mxu0
    %1348 = vmatprep.mubr.f32.mxu0 0.0
    %1349 = vmatmul.mubr.f32.gmra.mrb[0].mxu0 %v1215
    %v1350 = vpop.f32.mrb[0].mxu0
    %v1351 = vadd.f32 %v1243, %v1350
    %v1352 = vpop.f32.mrb[0].mxu0
    %1353 = vmatprep.mubr.f32.mxu0 0.0
    %1354 = vmatmul.mubr.f32.gmra.mrb[0].mxu0 %v1216
    %v1355 = vpop.f32.mrb[0].mxu0
    %v1356 = vadd.f32 %v1243, %v1355
    %v1357 = vpop.f32.mrb[0].mxu0
    %1358 = vmatprep.mubr.f32.mxu0 0.0
    %1359 = vmatmul.mubr.f32.gmra.mrb[0].mxu0 %v1217
    %v1360 = vpop.f32.mrb[0].mxu0
    %v1361 = vadd.f32 %v1243, %v1360
    %v1362 = vpop.f32.mrb[0].mxu0
    %1363 = vmatprep.mubr.f32.mxu0 0.0
    %1364 = vmatmul.mubr.f32.gmra.mrb[0].mxu0 %v1218
    %v1365 = vpop.f32.mrb[0].mxu0
    %v1366 = vadd.f32 %v1243, %v1365
    %v1367 = vpop.f32.mrb[0].mxu0
    %1368 = vmatprep.mubr.f32.mxu0 0.0
    %1369 = vmatmul.mubr.f32.gmra.mrb[0].mxu0 %v1219
    %v1370 = vpop.f32.mrb[0].mxu0
    %v1371 = vadd.f32 %v1243, %v1370
    %v1372 = vpop.f32.mrb[0].mxu0
    %1373 = vmatprep.mubr.f32.mxu0 0.0
    %1374 = vmatmul.mubr.f32.gmra.mrb[0].mxu0 %v1220
    %v1375 = vpop.f32.mrb[0].mxu0
    %v1376 = vadd.f32 %v1243, %v1375
    %v1377 = vpop.f32.mrb[0].mxu0
    %1378 = vmatprep.mubr.f32.mxu0 0.0
    %1379 = vmatmul.mubr.f32.gmra.mrb[0].mxu0 %v1221
    %v1380 = vpop.f32.mrb[0].mxu0
    %v1381 = vadd.f32 %v1243, %v1380
    %v1382 = vpop.f32.mrb[0].mxu0
    %1383 = vmatprep.mubr.f32.mxu0 0.0
    %1384 = vmatmul.mubr.f32.gmra.mrb[0].mxu0 %v1222
    %v1385 = vpop.f32.mrb[0].mxu0
    %v1386 = vadd.f32 %v1243, %v1385
    %v1387 = vpop.f32.mrb[0].mxu0
    %1388 = vdwg.mxu0
    %1389 = vst.msk [vmem:[%s4] sm:$0xff] %vm79, %v1311
    %1390 = vst.msk [vmem:[%s4 + $0x8] sm:$0xff] %vm79, %v1316
    %1391 = vst.msk [vmem:[%s4 + $0x10] sm:$0xff] %vm79, %v1321
    %1392 = vst.msk [vmem:[%s4 + $0x18] sm:$0xff] %vm79, %v1326
    %1393 = vst.msk [vmem:[%s4 + $0x20] sm:$0xff] %vm79, %v1331
    %1394 = vst.msk [vmem:[%s4 + $0x28] sm:$0xff] %vm79, %v1336
    %1395 = vst.msk [vmem:[%s4 + $0x30] sm:$0xff] %vm79, %v1341
    %1396 = vst.msk [vmem:[%s4 + $0x38] sm:$0xff] %vm79, %v1346
    %1397 = vst.msk [vmem:[%s4 + $0x40] sm:$0xff] %vm79, %v1351
    %1398 = vst.msk [vmem:[%s4 + $0x48] sm:$0xff] %vm79, %v1356
    %1399 = vst.msk [vmem:[%s4 + $0x50] sm:$0xff] %vm79, %v1361
    %1400 = vst.msk [vmem:[%s4 + $0x58] sm:$0xff] %vm79, %v1366
    %1401 = vst.msk [vmem:[%s4 + $0x60] sm:$0xff] %vm79, %v1371
    %1402 = vst.msk [vmem:[%s4 + $0x68] sm:$0xff] %vm79, %v1376
    %1403 = vst.msk [vmem:[%s4 + $0x70] sm:$0xff] %vm79, %v1381
    %1404 = vst.msk [vmem:[%s4 + $0x78] sm:$0xff] %vm79, %v1386
    // Predicated region
    $region22: #{forward.1} parent=1 // pred_check
      _
    $region23: #{forward.1} parent=1 // pred_check_branch
      %1406 = sbr.rel (0) target = $region25
    $region24: #{forward.1} parent=1 // pred_region
      _
    $region25: #{forward.1} parent=1 // pred_fallthru
      _
    // Predicated region
    $region26: #{forward.1} parent=1 // pred_check
      _
    $region27: #{forward.1} parent=1 // pred_check_branch
      %1408 = sbr.rel (0) target = $region29
    $region28: #{forward.1} parent=1 // pred_region
      _
    $region29: #{forward.1} parent=1 // pred_fallthru
      _
    // Predicated region
    $region30: #{forward.1} parent=1 // pred_check
      _
    $region31: #{forward.1} parent=1 // pred_check_branch
      %1410 = sbr.rel (0) target = $region33
    $region32: #{forward.1} parent=1 // pred_region
      _
    $region33: #{forward.1} parent=1 // pred_fallthru
      _
    // Predicated region
    $region34: #{forward.1} parent=1 // pred_check
      _
    $region35: #{forward.1} parent=1 // pred_check_branch
      %1412 = sbr.rel (0) target = $region37
    $region36: #{forward.1} parent=1 // pred_region
      _
    $region37: #{forward.1} parent=1 // pred_fallthru
      _
    // Predicated region
    $region38: #{forward.1} parent=1 // pred_check
      _
    $region39: #{forward.1} parent=1 // pred_check_branch
      %1414 = sbr.rel (0) target = $region41
    $region40: #{forward.1} parent=1 // pred_region
      _
    $region41: #{forward.1} parent=1 // pred_fallthru
      _
    // Predicated region
    $region42: #{forward.1} parent=1 // pred_check
      _
    $region43: #{forward.1} parent=1 // pred_check_branch
      %1416 = sbr.rel (0) target = $region45
    $region44: #{forward.1} parent=1 // pred_region
      _
    $region45: #{forward.1} parent=1 // pred_fallthru
      _
    %1417 = vsyncpa [#allocation3], 1

</llo_original>
